<compile_context>
chip_gen: v7x
topology: tpu7x:2x2x1
jax: 0.10.0
libtpu: 0.0.40
codegen_flags: <defaults>
</compile_context>

<pallas_src>
import jax
import jax.numpy as jnp
from jax import lax
from jax.experimental import pallas as pl
from jax.experimental.pallas import tpu as pltpu

EPS = 1e-5


# ---------------------------------------------------------------------------
# Kernel: B images per grid step, both stages fused.
# ---------------------------------------------------------------------------
def _make_kernel(B, H, WC):
    H2 = H + 2  # per-image row-padded height (1-row halo top & bottom)

    def kernel(x_ref, s1_ref, b1_ref, w1_ref, s2_ref, b2_ref, w2_ref,
               out_ref, xp_ref):
        """x_ref  : (B*H, WC)   f32, lane-dense activations (WC = W*C)
           s*_ref : (1, WC)     f32 folded BN scale, tiled across W
           b*_ref : (1, WC)     f32 folded BN bias,  tiled across W
           w*_ref : (WC, 3*WC)  bf16 banded conv weights, 3 dy taps concatenated
           out_ref: (B*H, WC)   f32
           xp_ref : (B*H2, WC)  f32 scratch: per-image row-padded BN output
        """
        # Zero only the 2 halo rows of each image block; interior rows are fully
        # overwritten below and the column (W) halo is folded into the weights.
        zrow = jnp.zeros((1, WC), jnp.float32)
        for bi in range(B):
            xp_ref[bi * H2:bi * H2 + 1, :] = zrow
            xp_ref[bi * H2 + H + 1:bi * H2 + H + 2, :] = zrow

        def stage(inp_list, s_ref, b_ref, w_ref):
            # inp_list: B arrays of shape (H, WC), f32.
            # Folded BN (f32, VPU) written into each image's interior rows.
            for bi in range(B):
                xp_ref[bi * H2 + 1:bi * H2 + 1 + H, :] = (
                    inp_list[bi] * s_ref[...] + b_ref[...])
            # One MXU matmul for all 3 dy taps of all B images:
            # (B*H2, WC) @ (WC, 3*WC), bf16 operands, f32 accumulation.
            y = jnp.dot(xp_ref[...].astype(jnp.bfloat16), w_ref[...],
                        preferred_element_type=jnp.float32)
            rows = B * H2
            # conv row r = y[r, tap0] + y[r+1, tap1] + y[r+2, tap2]
            s_all = (y[0:rows - 2, 0:WC]
                     + y[1:rows - 1, WC:2 * WC]
                     + y[2:rows, 2 * WC:3 * WC])
            # ReLU then residual (inplanes == planes), f32 on the VPU.
            return [jnp.maximum(s_all[bi * H2:bi * H2 + H, :], 0.0) + inp_list[bi]
                    for bi in range(B)]

        x_list = [x_ref[bi * H:(bi + 1) * H, :] for bi in range(B)]
        out1 = stage(x_list, s1_ref, b1_ref, w1_ref)         # stays on-chip
        out2 = stage(out1, s2_ref, b2_ref, w2_ref)
        for bi in range(B):
            out_ref[bi * H:(bi + 1) * H, :] = out2[bi].astype(out_ref.dtype)

    return kernel


# ---------------------------------------------------------------------------
# Wrapper-side weight / BN preparation.
# ---------------------------------------------------------------------------
def _fold_bn(gamma, beta, mean, var):
    scale = gamma / jnp.sqrt(var + EPS)
    bias = beta - mean * scale
    return scale, bias


def _banded_conv_weights(w_hwio, W):
    """(3,3,Cin,Cout) HWIO -> (W*Cin, 3*W*Cout) banded matrix (dy taps concat).

    For tap dy:  M_dy[ws*Cin + i, wd*Cout + o] = w[dy, dx, i, o] with
    ws = wd + dx - 1; out-of-range source columns are dropped, which reproduces
    SAME zero padding along W.  Columns of tap dy live at [dy*W*Cout, (dy+1)*W*Cout).
    """
    Cin, Cout = w_hwio.shape[2], w_hwio.shape[3]
    band = jnp.stack([jnp.eye(W, k=1 - dx, dtype=jnp.float32)
                      for dx in range(3)])                       # (dx, w_src, w_dst)
    m = jnp.einsum("dab,ydio->aiybo", band, w_hwio.astype(jnp.float32))
    return m.reshape(W * Cin, 3 * W * Cout)


def _pick_images_per_step(N, cap=8):
    """Largest divisor of N <= cap; prefer leaving >= 2 grid steps (v7x 2 TCs)."""
    divs = [b for b in range(1, min(cap, N) + 1) if N % b == 0]
    multi = [b for b in divs if N // b >= 2]
    if multi and max(multi) >= 2:
        return max(multi)
    return max(divs)


def _fused_block_nhwc(x_nhwc, s1, b1, w1_hwio, s2, b2, w2_hwio,
                      images_per_step=None):
    N, H, W, C = x_nhwc.shape
    assert w1_hwio.shape[2] == w1_hwio.shape[3] == C, "inplanes must equal planes"
    WC = W * C
    assert WC % 128 == 0, "keep W*C a multiple of 128 (lane-dense stores)"
    B = images_per_step if images_per_step is not None else _pick_images_per_step(N)
    assert N % B == 0
    H2 = H + 2

    x_flat = x_nhwc.reshape(N * H, WC).astype(jnp.float32)

    def tile_wc(v):
        return jnp.tile(v.astype(jnp.float32), W).reshape(1, WC)

    s1_t, b1_t = tile_wc(s1), tile_wc(b1)
    s2_t, b2_t = tile_wc(s2), tile_wc(b2)
    w1_b = _banded_conv_weights(w1_hwio, W).astype(jnp.bfloat16)
    w2_b = _banded_conv_weights(w2_hwio, W).astype(jnp.bfloat16)

    cost = pl.CostEstimate(
        flops=2 * 2 * N * H2 * WC * (3 * WC),          # 2 stages * 2*M*K*N
        transcendentals=0,
        bytes_accessed=2 * N * H * WC * 4 + 2 * WC * 3 * WC * 2 + 4 * WC * 4)

    out_flat = pl.pallas_call(
        _make_kernel(B, H, WC),
        out_shape=jax.ShapeDtypeStruct((N * H, WC), jnp.float32),
        grid=(N // B,),
        in_specs=[
            pl.BlockSpec((B * H, WC), lambda n: (n, 0)),
            pl.BlockSpec((1, WC), lambda n: (0, 0)),
            pl.BlockSpec((1, WC), lambda n: (0, 0)),
            pl.BlockSpec((WC, 3 * WC), lambda n: (0, 0)),
            pl.BlockSpec((1, WC), lambda n: (0, 0)),
            pl.BlockSpec((1, WC), lambda n: (0, 0)),
            pl.BlockSpec((WC, 3 * WC), lambda n: (0, 0)),
        ],
        out_specs=pl.BlockSpec((B * H, WC), lambda n: (n, 0)),
        scratch_shapes=[pltpu.VMEM((B * H2, WC), jnp.float32)],
        compiler_params=pltpu.CompilerParams(
            dimension_semantics=("parallel",)),
        cost_estimate=cost,
    )(x_flat, s1_t, b1_t, w1_b, s2_t, b2_t, w2_b)

    return out_flat.reshape(N, H, W, C)


def eb_basic_block_forward(x_nchw, params, images_per_step=None):
    """x_nchw: (N, C, H, W) float32, matching the PyTorch module's input."""
    s1, b1 = _fold_bn(params["bn1_gamma"], params["bn1_beta"],
                      params["bn1_mean"], params["bn1_var"])
    s2, b2 = _fold_bn(params["bn2_gamma"], params["bn2_beta"],
                      params["bn2_mean"], params["bn2_var"])
    # TODO(synk): NCHW<->NHWC transposes only exist to match the PyTorch layout;
    # an NHWC end-to-end model should call _fused_block_nhwc directly.
    x_nhwc = jnp.transpose(x_nchw, (0, 2, 3, 1))
    out_nhwc = _fused_block_nhwc(x_nhwc, s1, b1, params["w1_hwio"],
                                 s2, b2, params["w2_hwio"],
                                 images_per_step=images_per_step)
    return jnp.transpose(out_nhwc, (0, 3, 1, 2))


# ---------------------------------------------------------------------------
# Pure-JAX reference (same math via lax.conv) for correctness checks.
# ---------------------------------------------------------------------------
def _reference_forward(x_nchw, params, conv_dtype=jnp.float32):
    x = jnp.transpose(x_nchw, (0, 2, 3, 1))

    def bn(v, g, b, m, var):
        return (v - m) / jnp.sqrt(var + EPS) * g + b

    def conv(v, w):
        return lax.conv_general_dilated(
            v.astype(conv_dtype), w.astype(conv_dtype),
            window_strides=(1, 1), padding="SAME",
            dimension_numbers=("NHWC", "HWIO", "NHWC"),
            preferred_element_type=jnp.float32)

    h1 = bn(x, params["bn1_gamma"], params["bn1_beta"],
            params["bn1_mean"], params["bn1_var"])
    out1 = jnp.maximum(conv(h1, params["w1_hwio"]), 0.0) + x
    h2 = bn(out1, params["bn2_gamma"], params["bn2_beta"],
            params["bn2_mean"], params["bn2_var"])
    out2 = jnp.maximum(conv(h2, params["w2_hwio"]), 0.0) + out1
    return jnp.transpose(out2, (0, 3, 1, 2))


def make_params(key, inplanes, planes):
    ks = jax.random.split(key, 10)
    # conv weights in PyTorch OIHW, transposed to HWIO
    w1_oihw = 0.1 * jax.random.normal(ks[0], (planes, inplanes, 3, 3), jnp.float32)
    w2_oihw = 0.1 * jax.random.normal(ks[1], (planes, planes, 3, 3), jnp.float32)
    return {
        "w1_hwio": jnp.transpose(w1_oihw, (2, 3, 1, 0)),
        "w2_hwio": jnp.transpose(w2_oihw, (2, 3, 1, 0)),
        "bn1_gamma": jax.random.uniform(ks[2], (inplanes,), jnp.float32, 0.5, 1.5),
        "bn1_beta": 0.1 * jax.random.normal(ks[3], (inplanes,), jnp.float32),
        "bn1_mean": 0.1 * jax.random.normal(ks[4], (inplanes,), jnp.float32),
        "bn1_var": jax.random.uniform(ks[5], (inplanes,), jnp.float32, 0.5, 1.5),
        "bn2_gamma": jax.random.uniform(ks[6], (planes,), jnp.float32, 0.5, 1.5),
        "bn2_beta": 0.1 * jax.random.normal(ks[7], (planes,), jnp.float32),
        "bn2_mean": 0.1 * jax.random.normal(ks[8], (planes,), jnp.float32),
        "bn2_var": jax.random.uniform(ks[9], (planes,), jnp.float32, 0.5, 1.5),
    }


if __name__ == "__main__":
    key = jax.random.PRNGKey(0)
    k_x, k_p = jax.random.split(key)

    N, H, W = 16, 16, 16
    inplanes = planes = 8          # residual add requires inplanes == planes; W*C = 128

    x = jax.random.normal(k_x, (N, inplanes, H, W), jnp.float32)   # NCHW
    params = make_params(k_p, inplanes, planes)

    out = jax.block_until_ready(eb_basic_block_forward(x, params))
    assert out.shape == (N, planes, H, W)

    # Tight check vs. a reference that matches the kernel's bf16 matmul operands
    # (f32 accumulation), then a looser check vs. the pure-f32 module semantics
    # (bf16 rounding of the conv operands is the only deviation).
    ref16 = jax.block_until_ready(_reference_forward(x, params, jnp.bfloat16))
    ref32 = jax.block_until_ready(_reference_forward(x, params, jnp.float32))
    assert jnp.allclose(out, ref16, atol=2e-2, rtol=2e-2), (
        "bf16-matched mismatch: max abs err = %e"
        % float(jnp.max(jnp.abs(out - ref16))))
    assert jnp.allclose(out, ref32, atol=1e-1, rtol=1e-1), (
        "f32 mismatch: max abs err = %e"
        % float(jnp.max(jnp.abs(out - ref32))))

    print("KERNEL_OK")
</pallas_src>

<mosaic_0001>
module attributes {stable_mosaic.version = 11 : i64} {
  func.func @kernel(%arg0: i32, %arg1: memref<128x128xf32, #tpu.memory_space<vmem>>, %arg2: memref<1x128xf32, #tpu.memory_space<vmem>>, %arg3: memref<1x128xf32, #tpu.memory_space<vmem>>, %arg4: memref<128x384xbf16, #tpu.memory_space<vmem>>, %arg5: memref<1x128xf32, #tpu.memory_space<vmem>>, %arg6: memref<1x128xf32, #tpu.memory_space<vmem>>, %arg7: memref<128x384xbf16, #tpu.memory_space<vmem>>, %arg8: memref<128x128xf32, #tpu.memory_space<vmem>>, %arg9: memref<144x128xf32, #tpu.memory_space<vmem>>) attributes {dimension_semantics = [#tpu.dimension_semantics<parallel>], iteration_bounds = array<i64: 2>, scalar_prefetch = 0 : i64, scratch_operands = 1 : i64, tpu.core_type = #tpu.core_type<tc>, window_params = [{transform_indices = @transform_0, window_bounds = array<i64: 128, 128>}, {pipeline_mode = #tpu.pipeline_mode<synchronous>, transform_indices = @transform_1, window_bounds = array<i64: 1, 128>}, {pipeline_mode = #tpu.pipeline_mode<synchronous>, transform_indices = @transform_2, window_bounds = array<i64: 1, 128>}, {pipeline_mode = #tpu.pipeline_mode<synchronous>, transform_indices = @transform_3, window_bounds = array<i64: 128, 384>}, {pipeline_mode = #tpu.pipeline_mode<synchronous>, transform_indices = @transform_4, window_bounds = array<i64: 1, 128>}, {pipeline_mode = #tpu.pipeline_mode<synchronous>, transform_indices = @transform_5, window_bounds = array<i64: 1, 128>}, {pipeline_mode = #tpu.pipeline_mode<synchronous>, transform_indices = @transform_6, window_bounds = array<i64: 128, 384>}, {transform_indices = @transform_7, window_bounds = array<i64: 128, 128>}]} {
    %cst = arith.constant 0.000000e+00 : f32
    %0 = vector.broadcast %cst : f32 to vector<1x128xf32>
    %c0 = arith.constant 0 : index
    %c0_0 = arith.constant 0 : index
    %1 = vector.load %arg9[%c0, %c0_0] : memref<144x128xf32, #tpu.memory_space<vmem>>, vector<1x128xf32>
    tpu.vector_store %arg9[%c0, %c0_0], %0 {strides = array<i32>} : memref<144x128xf32, #tpu.memory_space<vmem>>, vector<1x128xf32>,
    %c17 = arith.constant 17 : index
    %c0_1 = arith.constant 0 : index
    %2 = vector.load %arg9[%c17, %c0_1] : memref<144x128xf32, #tpu.memory_space<vmem>>, vector<1x128xf32>
    tpu.vector_store %arg9[%c17, %c0_1], %0 {strides = array<i32>} : memref<144x128xf32, #tpu.memory_space<vmem>>, vector<1x128xf32>,
    %c18 = arith.constant 18 : index
    %c0_2 = arith.constant 0 : index
    %3 = vector.load %arg9[%c18, %c0_2] : memref<144x128xf32, #tpu.memory_space<vmem>>, vector<1x128xf32>
    tpu.vector_store %arg9[%c18, %c0_2], %0 {strides = array<i32>} : memref<144x128xf32, #tpu.memory_space<vmem>>, vector<1x128xf32>,
    %c35 = arith.constant 35 : index
    %c0_3 = arith.constant 0 : index
    %4 = vector.load %arg9[%c35, %c0_3] : memref<144x128xf32, #tpu.memory_space<vmem>>, vector<1x128xf32>
    tpu.vector_store %arg9[%c35, %c0_3], %0 {strides = array<i32>} : memref<144x128xf32, #tpu.memory_space<vmem>>, vector<1x128xf32>,
    %c36 = arith.constant 36 : index
    %c0_4 = arith.constant 0 : index
    %5 = vector.load %arg9[%c36, %c0_4] : memref<144x128xf32, #tpu.memory_space<vmem>>, vector<1x128xf32>
    tpu.vector_store %arg9[%c36, %c0_4], %0 {strides = array<i32>} : memref<144x128xf32, #tpu.memory_space<vmem>>, vector<1x128xf32>,
    %c53 = arith.constant 53 : index
    %c0_5 = arith.constant 0 : index
    %6 = vector.load %arg9[%c53, %c0_5] : memref<144x128xf32, #tpu.memory_space<vmem>>, vector<1x128xf32>
    tpu.vector_store %arg9[%c53, %c0_5], %0 {strides = array<i32>} : memref<144x128xf32, #tpu.memory_space<vmem>>, vector<1x128xf32>,
    %c54 = arith.constant 54 : index
    %c0_6 = arith.constant 0 : index
    %7 = vector.load %arg9[%c54, %c0_6] : memref<144x128xf32, #tpu.memory_space<vmem>>, vector<1x128xf32>
    tpu.vector_store %arg9[%c54, %c0_6], %0 {strides = array<i32>} : memref<144x128xf32, #tpu.memory_space<vmem>>, vector<1x128xf32>,
    %c71 = arith.constant 71 : index
    %c0_7 = arith.constant 0 : index
    %8 = vector.load %arg9[%c71, %c0_7] : memref<144x128xf32, #tpu.memory_space<vmem>>, vector<1x128xf32>
    tpu.vector_store %arg9[%c71, %c0_7], %0 {strides = array<i32>} : memref<144x128xf32, #tpu.memory_space<vmem>>, vector<1x128xf32>,
    %c72 = arith.constant 72 : index
    %c0_8 = arith.constant 0 : index
    %9 = vector.load %arg9[%c72, %c0_8] : memref<144x128xf32, #tpu.memory_space<vmem>>, vector<1x128xf32>
    tpu.vector_store %arg9[%c72, %c0_8], %0 {strides = array<i32>} : memref<144x128xf32, #tpu.memory_space<vmem>>, vector<1x128xf32>,
    %c89 = arith.constant 89 : index
    %c0_9 = arith.constant 0 : index
    %10 = vector.load %arg9[%c89, %c0_9] : memref<144x128xf32, #tpu.memory_space<vmem>>, vector<1x128xf32>
    tpu.vector_store %arg9[%c89, %c0_9], %0 {strides = array<i32>} : memref<144x128xf32, #tpu.memory_space<vmem>>, vector<1x128xf32>,
    %c90 = arith.constant 90 : index
    %c0_10 = arith.constant 0 : index
    %11 = vector.load %arg9[%c90, %c0_10] : memref<144x128xf32, #tpu.memory_space<vmem>>, vector<1x128xf32>
    tpu.vector_store %arg9[%c90, %c0_10], %0 {strides = array<i32>} : memref<144x128xf32, #tpu.memory_space<vmem>>, vector<1x128xf32>,
    %c107 = arith.constant 107 : index
    %c0_11 = arith.constant 0 : index
    %12 = vector.load %arg9[%c107, %c0_11] : memref<144x128xf32, #tpu.memory_space<vmem>>, vector<1x128xf32>
    tpu.vector_store %arg9[%c107, %c0_11], %0 {strides = array<i32>} : memref<144x128xf32, #tpu.memory_space<vmem>>, vector<1x128xf32>,
    %c108 = arith.constant 108 : index
    %c0_12 = arith.constant 0 : index
    %13 = vector.load %arg9[%c108, %c0_12] : memref<144x128xf32, #tpu.memory_space<vmem>>, vector<1x128xf32>
    tpu.vector_store %arg9[%c108, %c0_12], %0 {strides = array<i32>} : memref<144x128xf32, #tpu.memory_space<vmem>>, vector<1x128xf32>,
    %c125 = arith.constant 125 : index
    %c0_13 = arith.constant 0 : index
    %14 = vector.load %arg9[%c125, %c0_13] : memref<144x128xf32, #tpu.memory_space<vmem>>, vector<1x128xf32>
    tpu.vector_store %arg9[%c125, %c0_13], %0 {strides = array<i32>} : memref<144x128xf32, #tpu.memory_space<vmem>>, vector<1x128xf32>,
    %c126 = arith.constant 126 : index
    %c0_14 = arith.constant 0 : index
    %15 = vector.load %arg9[%c126, %c0_14] : memref<144x128xf32, #tpu.memory_space<vmem>>, vector<1x128xf32>
    tpu.vector_store %arg9[%c126, %c0_14], %0 {strides = array<i32>} : memref<144x128xf32, #tpu.memory_space<vmem>>, vector<1x128xf32>,
    %c143 = arith.constant 143 : index
    %c0_15 = arith.constant 0 : index
    %16 = vector.load %arg9[%c143, %c0_15] : memref<144x128xf32, #tpu.memory_space<vmem>>, vector<1x128xf32>
    tpu.vector_store %arg9[%c143, %c0_15], %0 {strides = array<i32>} : memref<144x128xf32, #tpu.memory_space<vmem>>, vector<1x128xf32>,
    %c0_16 = arith.constant 0 : index
    %c0_17 = arith.constant 0 : index
    %17 = vector.load %arg1[%c0_16, %c0_17] : memref<128x128xf32, #tpu.memory_space<vmem>>, vector<16x128xf32>
    %c16 = arith.constant 16 : index
    %c0_18 = arith.constant 0 : index
    %18 = vector.load %arg1[%c16, %c0_18] : memref<128x128xf32, #tpu.memory_space<vmem>>, vector<16x128xf32>
    %c32 = arith.constant 32 : index
    %c0_19 = arith.constant 0 : index
    %19 = vector.load %arg1[%c32, %c0_19] : memref<128x128xf32, #tpu.memory_space<vmem>>, vector<16x128xf32>
    %c48 = arith.constant 48 : index
    %c0_20 = arith.constant 0 : index
    %20 = vector.load %arg1[%c48, %c0_20] : memref<128x128xf32, #tpu.memory_space<vmem>>, vector<16x128xf32>
    %c64 = arith.constant 64 : index
    %c0_21 = arith.constant 0 : index
    %21 = vector.load %arg1[%c64, %c0_21] : memref<128x128xf32, #tpu.memory_space<vmem>>, vector<16x128xf32>
    %c80 = arith.constant 80 : index
    %c0_22 = arith.constant 0 : index
    %22 = vector.load %arg1[%c80, %c0_22] : memref<128x128xf32, #tpu.memory_space<vmem>>, vector<16x128xf32>
    %c96 = arith.constant 96 : index
    %c0_23 = arith.constant 0 : index
    %23 = vector.load %arg1[%c96, %c0_23] : memref<128x128xf32, #tpu.memory_space<vmem>>, vector<16x128xf32>
    %c112 = arith.constant 112 : index
    %c0_24 = arith.constant 0 : index
    %24 = vector.load %arg1[%c112, %c0_24] : memref<128x128xf32, #tpu.memory_space<vmem>>, vector<16x128xf32>
    %c0_25 = arith.constant 0 : index
    %c0_26 = arith.constant 0 : index
    %25 = vector.load %arg2[%c0_25, %c0_26] : memref<1x128xf32, #tpu.memory_space<vmem>>, vector<1x128xf32>
    %26 = vector.broadcast %25 : vector<1x128xf32> to vector<16x128xf32>
    %27 = arith.mulf %17, %26 : vector<16x128xf32>
    %c0_27 = arith.constant 0 : index
    %c0_28 = arith.constant 0 : index
    %28 = vector.load %arg3[%c0_27, %c0_28] : memref<1x128xf32, #tpu.memory_space<vmem>>, vector<1x128xf32>
    %29 = vector.broadcast %28 : vector<1x128xf32> to vector<16x128xf32>
    %30 = arith.addf %27, %29 : vector<16x128xf32>
    %c1 = arith.constant 1 : index
    %c0_29 = arith.constant 0 : index
    %31 = vector.load %arg9[%c1, %c0_29] : memref<144x128xf32, #tpu.memory_space<vmem>>, vector<16x128xf32>
    tpu.vector_store %arg9[%c1, %c0_29], %30 {strides = array<i32>} : memref<144x128xf32, #tpu.memory_space<vmem>>, vector<16x128xf32>,
    %c0_30 = arith.constant 0 : index
    %c0_31 = arith.constant 0 : index
    %32 = vector.load %arg2[%c0_30, %c0_31] : memref<1x128xf32, #tpu.memory_space<vmem>>, vector<1x128xf32>
    %33 = vector.broadcast %32 : vector<1x128xf32> to vector<16x128xf32>
    %34 = arith.mulf %18, %33 : vector<16x128xf32>
    %c0_32 = arith.constant 0 : index
    %c0_33 = arith.constant 0 : index
    %35 = vector.load %arg3[%c0_32, %c0_33] : memref<1x128xf32, #tpu.memory_space<vmem>>, vector<1x128xf32>
    %36 = vector.broadcast %35 : vector<1x128xf32> to vector<16x128xf32>
    %37 = arith.addf %34, %36 : vector<16x128xf32>
    %c19 = arith.constant 19 : index
    %c0_34 = arith.constant 0 : index
    %38 = vector.load %arg9[%c19, %c0_34] : memref<144x128xf32, #tpu.memory_space<vmem>>, vector<16x128xf32>
    tpu.vector_store %arg9[%c19, %c0_34], %37 {strides = array<i32>} : memref<144x128xf32, #tpu.memory_space<vmem>>, vector<16x128xf32>,
    %c0_35 = arith.constant 0 : index
    %c0_36 = arith.constant 0 : index
    %39 = vector.load %arg2[%c0_35, %c0_36] : memref<1x128xf32, #tpu.memory_space<vmem>>, vector<1x128xf32>
    %40 = vector.broadcast %39 : vector<1x128xf32> to vector<16x128xf32>
    %41 = arith.mulf %19, %40 : vector<16x128xf32>
    %c0_37 = arith.constant 0 : index
    %c0_38 = arith.constant 0 : index
    %42 = vector.load %arg3[%c0_37, %c0_38] : memref<1x128xf32, #tpu.memory_space<vmem>>, vector<1x128xf32>
    %43 = vector.broadcast %42 : vector<1x128xf32> to vector<16x128xf32>
    %44 = arith.addf %41, %43 : vector<16x128xf32>
    %c37 = arith.constant 37 : index
    %c0_39 = arith.constant 0 : index
    %45 = vector.load %arg9[%c37, %c0_39] : memref<144x128xf32, #tpu.memory_space<vmem>>, vector<16x128xf32>
    tpu.vector_store %arg9[%c37, %c0_39], %44 {strides = array<i32>} : memref<144x128xf32, #tpu.memory_space<vmem>>, vector<16x128xf32>,
    %c0_40 = arith.constant 0 : index
    %c0_41 = arith.constant 0 : index
    %46 = vector.load %arg2[%c0_40, %c0_41] : memref<1x128xf32, #tpu.memory_space<vmem>>, vector<1x128xf32>
    %47 = vector.broadcast %46 : vector<1x128xf32> to vector<16x128xf32>
    %48 = arith.mulf %20, %47 : vector<16x128xf32>
    %c0_42 = arith.constant 0 : index
    %c0_43 = arith.constant 0 : index
    %49 = vector.load %arg3[%c0_42, %c0_43] : memref<1x128xf32, #tpu.memory_space<vmem>>, vector<1x128xf32>
    %50 = vector.broadcast %49 : vector<1x128xf32> to vector<16x128xf32>
    %51 = arith.addf %48, %50 : vector<16x128xf32>
    %c55 = arith.constant 55 : index
    %c0_44 = arith.constant 0 : index
    %52 = vector.load %arg9[%c55, %c0_44] : memref<144x128xf32, #tpu.memory_space<vmem>>, vector<16x128xf32>
    tpu.vector_store %arg9[%c55, %c0_44], %51 {strides = array<i32>} : memref<144x128xf32, #tpu.memory_space<vmem>>, vector<16x128xf32>,
    %c0_45 = arith.constant 0 : index
    %c0_46 = arith.constant 0 : index
    %53 = vector.load %arg2[%c0_45, %c0_46] : memref<1x128xf32, #tpu.memory_space<vmem>>, vector<1x128xf32>
    %54 = vector.broadcast %53 : vector<1x128xf32> to vector<16x128xf32>
    %55 = arith.mulf %21, %54 : vector<16x128xf32>
    %c0_47 = arith.constant 0 : index
    %c0_48 = arith.constant 0 : index
    %56 = vector.load %arg3[%c0_47, %c0_48] : memref<1x128xf32, #tpu.memory_space<vmem>>, vector<1x128xf32>
    %57 = vector.broadcast %56 : vector<1x128xf32> to vector<16x128xf32>
    %58 = arith.addf %55, %57 : vector<16x128xf32>
    %c73 = arith.constant 73 : index
    %c0_49 = arith.constant 0 : index
    %59 = vector.load %arg9[%c73, %c0_49] : memref<144x128xf32, #tpu.memory_space<vmem>>, vector<16x128xf32>
    tpu.vector_store %arg9[%c73, %c0_49], %58 {strides = array<i32>} : memref<144x128xf32, #tpu.memory_space<vmem>>, vector<16x128xf32>,
    %c0_50 = arith.constant 0 : index
    %c0_51 = arith.constant 0 : index
    %60 = vector.load %arg2[%c0_50, %c0_51] : memref<1x128xf32, #tpu.memory_space<vmem>>, vector<1x128xf32>
    %61 = vector.broadcast %60 : vector<1x128xf32> to vector<16x128xf32>
    %62 = arith.mulf %22, %61 : vector<16x128xf32>
    %c0_52 = arith.constant 0 : index
    %c0_53 = arith.constant 0 : index
    %63 = vector.load %arg3[%c0_52, %c0_53] : memref<1x128xf32, #tpu.memory_space<vmem>>, vector<1x128xf32>
    %64 = vector.broadcast %63 : vector<1x128xf32> to vector<16x128xf32>
    %65 = arith.addf %62, %64 : vector<16x128xf32>
    %c91 = arith.constant 91 : index
    %c0_54 = arith.constant 0 : index
    %66 = vector.load %arg9[%c91, %c0_54] : memref<144x128xf32, #tpu.memory_space<vmem>>, vector<16x128xf32>
    tpu.vector_store %arg9[%c91, %c0_54], %65 {strides = array<i32>} : memref<144x128xf32, #tpu.memory_space<vmem>>, vector<16x128xf32>,
    %c0_55 = arith.constant 0 : index
    %c0_56 = arith.constant 0 : index
    %67 = vector.load %arg2[%c0_55, %c0_56] : memref<1x128xf32, #tpu.memory_space<vmem>>, vector<1x128xf32>
    %68 = vector.broadcast %67 : vector<1x128xf32> to vector<16x128xf32>
    %69 = arith.mulf %23, %68 : vector<16x128xf32>
    %c0_57 = arith.constant 0 : index
    %c0_58 = arith.constant 0 : index
    %70 = vector.load %arg3[%c0_57, %c0_58] : memref<1x128xf32, #tpu.memory_space<vmem>>, vector<1x128xf32>
    %71 = vector.broadcast %70 : vector<1x128xf32> to vector<16x128xf32>
    %72 = arith.addf %69, %71 : vector<16x128xf32>
    %c109 = arith.constant 109 : index
    %c0_59 = arith.constant 0 : index
    %73 = vector.load %arg9[%c109, %c0_59] : memref<144x128xf32, #tpu.memory_space<vmem>>, vector<16x128xf32>
    tpu.vector_store %arg9[%c109, %c0_59], %72 {strides = array<i32>} : memref<144x128xf32, #tpu.memory_space<vmem>>, vector<16x128xf32>,
    %c0_60 = arith.constant 0 : index
    %c0_61 = arith.constant 0 : index
    %74 = vector.load %arg2[%c0_60, %c0_61] : memref<1x128xf32, #tpu.memory_space<vmem>>, vector<1x128xf32>
    %75 = vector.broadcast %74 : vector<1x128xf32> to vector<16x128xf32>
    %76 = arith.mulf %24, %75 : vector<16x128xf32>
    %c0_62 = arith.constant 0 : index
    %c0_63 = arith.constant 0 : index
    %77 = vector.load %arg3[%c0_62, %c0_63] : memref<1x128xf32, #tpu.memory_space<vmem>>, vector<1x128xf32>
    %78 = vector.broadcast %77 : vector<1x128xf32> to vector<16x128xf32>
    %79 = arith.addf %76, %78 : vector<16x128xf32>
    %c127 = arith.constant 127 : index
    %c0_64 = arith.constant 0 : index
    %80 = vector.load %arg9[%c127, %c0_64] : memref<144x128xf32, #tpu.memory_space<vmem>>, vector<16x128xf32>
    tpu.vector_store %arg9[%c127, %c0_64], %79 {strides = array<i32>} : memref<144x128xf32, #tpu.memory_space<vmem>>, vector<16x128xf32>,
    %c0_65 = arith.constant 0 : index
    %c0_66 = arith.constant 0 : index
    %81 = vector.load %arg9[%c0_65, %c0_66] : memref<144x128xf32, #tpu.memory_space<vmem>>, vector<144x128xf32>
    %82 = arith.truncf %81 : vector<144x128xf32> to vector<144x128xbf16>
    %c0_67 = arith.constant 0 : index
    %c0_68 = arith.constant 0 : index
    %83 = vector.load %arg4[%c0_67, %c0_68] : memref<128x384xbf16, #tpu.memory_space<vmem>>, vector<128x384xbf16>
    %cst_69 = arith.constant dense<0.000000e+00> : vector<144x384xf32>
    %84 = tpu.matmul %82, %83, %cst_69 {dimension_numbers = #tpu.dot_dimension_numbers<[1], [0], [0], [1], [0, 0, 1, 1], [], []>} : vector<144x128xbf16>, vector<128x384xbf16>, vector<144x384xf32> -> vector<144x384xf32>
    %85 = vector.extract_strided_slice %84 {offsets = [0, 0], sizes = [142, 128], strides = [1, 1]} : vector<144x384xf32> to vector<142x128xf32>
    %86 = vector.extract_strided_slice %84 {offsets = [1, 128], sizes = [142, 128], strides = [1, 1]} : vector<144x384xf32> to vector<142x128xf32>
    %87 = arith.addf %85, %86 : vector<142x128xf32>
    %88 = vector.extract_strided_slice %84 {offsets = [2, 256], sizes = [142, 128], strides = [1, 1]} : vector<144x384xf32> to vector<142x128xf32>
    %89 = arith.addf %87, %88 : vector<142x128xf32>
    %90 = vector.extract_strided_slice %89 {offsets = [0, 0], sizes = [16, 128], strides = [1, 1]} : vector<142x128xf32> to vector<16x128xf32>
    %cst_70 = arith.constant 0.000000e+00 : f32
    %91 = vector.broadcast %cst_70 : f32 to vector<16x128xf32>
    %92 = arith.maximumf %90, %91 : vector<16x128xf32>
    %93 = arith.addf %92, %17 : vector<16x128xf32>
    %94 = vector.extract_strided_slice %89 {offsets = [18, 0], sizes = [16, 128], strides = [1, 1]} : vector<142x128xf32> to vector<16x128xf32>
    %cst_71 = arith.constant 0.000000e+00 : f32
    %95 = vector.broadcast %cst_71 : f32 to vector<16x128xf32>
    %96 = arith.maximumf %94, %95 : vector<16x128xf32>
    %97 = arith.addf %96, %18 : vector<16x128xf32>
    %98 = vector.extract_strided_slice %89 {offsets = [36, 0], sizes = [16, 128], strides = [1, 1]} : vector<142x128xf32> to vector<16x128xf32>
    %cst_72 = arith.constant 0.000000e+00 : f32
    %99 = vector.broadcast %cst_72 : f32 to vector<16x128xf32>
    %100 = arith.maximumf %98, %99 : vector<16x128xf32>
    %101 = arith.addf %100, %19 : vector<16x128xf32>
    %102 = vector.extract_strided_slice %89 {offsets = [54, 0], sizes = [16, 128], strides = [1, 1]} : vector<142x128xf32> to vector<16x128xf32>
    %cst_73 = arith.constant 0.000000e+00 : f32
    %103 = vector.broadcast %cst_73 : f32 to vector<16x128xf32>
    %104 = arith.maximumf %102, %103 : vector<16x128xf32>
    %105 = arith.addf %104, %20 : vector<16x128xf32>
    %106 = vector.extract_strided_slice %89 {offsets = [72, 0], sizes = [16, 128], strides = [1, 1]} : vector<142x128xf32> to vector<16x128xf32>
    %cst_74 = arith.constant 0.000000e+00 : f32
    %107 = vector.broadcast %cst_74 : f32 to vector<16x128xf32>
    %108 = arith.maximumf %106, %107 : vector<16x128xf32>
    %109 = arith.addf %108, %21 : vector<16x128xf32>
    %110 = vector.extract_strided_slice %89 {offsets = [90, 0], sizes = [16, 128], strides = [1, 1]} : vector<142x128xf32> to vector<16x128xf32>
    %cst_75 = arith.constant 0.000000e+00 : f32
    %111 = vector.broadcast %cst_75 : f32 to vector<16x128xf32>
    %112 = arith.maximumf %110, %111 : vector<16x128xf32>
    %113 = arith.addf %112, %22 : vector<16x128xf32>
    %114 = vector.extract_strided_slice %89 {offsets = [108, 0], sizes = [16, 128], strides = [1, 1]} : vector<142x128xf32> to vector<16x128xf32>
    %cst_76 = arith.constant 0.000000e+00 : f32
    %115 = vector.broadcast %cst_76 : f32 to vector<16x128xf32>
    %116 = arith.maximumf %114, %115 : vector<16x128xf32>
    %117 = arith.addf %116, %23 : vector<16x128xf32>
    %118 = vector.extract_strided_slice %89 {offsets = [126, 0], sizes = [16, 128], strides = [1, 1]} : vector<142x128xf32> to vector<16x128xf32>
    %cst_77 = arith.constant 0.000000e+00 : f32
    %119 = vector.broadcast %cst_77 : f32 to vector<16x128xf32>
    %120 = arith.maximumf %118, %119 : vector<16x128xf32>
    %121 = arith.addf %120, %24 : vector<16x128xf32>
    %c0_78 = arith.constant 0 : index
    %c0_79 = arith.constant 0 : index
    %122 = vector.load %arg5[%c0_78, %c0_79] : memref<1x128xf32, #tpu.memory_space<vmem>>, vector<1x128xf32>
    %123 = vector.broadcast %122 : vector<1x128xf32> to vector<16x128xf32>
    %124 = arith.mulf %93, %123 : vector<16x128xf32>
    %c0_80 = arith.constant 0 : index
    %c0_81 = arith.constant 0 : index
    %125 = vector.load %arg6[%c0_80, %c0_81] : memref<1x128xf32, #tpu.memory_space<vmem>>, vector<1x128xf32>
    %126 = vector.broadcast %125 : vector<1x128xf32> to vector<16x128xf32>
    %127 = arith.addf %124, %126 : vector<16x128xf32>
    %c1_82 = arith.constant 1 : index
    %c0_83 = arith.constant 0 : index
    %128 = vector.load %arg9[%c1_82, %c0_83] : memref<144x128xf32, #tpu.memory_space<vmem>>, vector<16x128xf32>
    tpu.vector_store %arg9[%c1_82, %c0_83], %127 {strides = array<i32>} : memref<144x128xf32, #tpu.memory_space<vmem>>, vector<16x128xf32>,
    %c0_84 = arith.constant 0 : index
    %c0_85 = arith.constant 0 : index
    %129 = vector.load %arg5[%c0_84, %c0_85] : memref<1x128xf32, #tpu.memory_space<vmem>>, vector<1x128xf32>
    %130 = vector.broadcast %129 : vector<1x128xf32> to vector<16x128xf32>
    %131 = arith.mulf %97, %130 : vector<16x128xf32>
    %c0_86 = arith.constant 0 : index
    %c0_87 = arith.constant 0 : index
    %132 = vector.load %arg6[%c0_86, %c0_87] : memref<1x128xf32, #tpu.memory_space<vmem>>, vector<1x128xf32>
    %133 = vector.broadcast %132 : vector<1x128xf32> to vector<16x128xf32>
    %134 = arith.addf %131, %133 : vector<16x128xf32>
    %c19_88 = arith.constant 19 : index
    %c0_89 = arith.constant 0 : index
    %135 = vector.load %arg9[%c19_88, %c0_89] : memref<144x128xf32, #tpu.memory_space<vmem>>, vector<16x128xf32>
    tpu.vector_store %arg9[%c19_88, %c0_89], %134 {strides = array<i32>} : memref<144x128xf32, #tpu.memory_space<vmem>>, vector<16x128xf32>,
    %c0_90 = arith.constant 0 : index
    %c0_91 = arith.constant 0 : index
    %136 = vector.load %arg5[%c0_90, %c0_91] : memref<1x128xf32, #tpu.memory_space<vmem>>, vector<1x128xf32>
    %137 = vector.broadcast %136 : vector<1x128xf32> to vector<16x128xf32>
    %138 = arith.mulf %101, %137 : vector<16x128xf32>
    %c0_92 = arith.constant 0 : index
    %c0_93 = arith.constant 0 : index
    %139 = vector.load %arg6[%c0_92, %c0_93] : memref<1x128xf32, #tpu.memory_space<vmem>>, vector<1x128xf32>
    %140 = vector.broadcast %139 : vector<1x128xf32> to vector<16x128xf32>
    %141 = arith.addf %138, %140 : vector<16x128xf32>
    %c37_94 = arith.constant 37 : index
    %c0_95 = arith.constant 0 : index
    %142 = vector.load %arg9[%c37_94, %c0_95] : memref<144x128xf32, #tpu.memory_space<vmem>>, vector<16x128xf32>
    tpu.vector_store %arg9[%c37_94, %c0_95], %141 {strides = array<i32>} : memref<144x128xf32, #tpu.memory_space<vmem>>, vector<16x128xf32>,
    %c0_96 = arith.constant 0 : index
    %c0_97 = arith.constant 0 : index
    %143 = vector.load %arg5[%c0_96, %c0_97] : memref<1x128xf32, #tpu.memory_space<vmem>>, vector<1x128xf32>
    %144 = vector.broadcast %143 : vector<1x128xf32> to vector<16x128xf32>
    %145 = arith.mulf %105, %144 : vector<16x128xf32>
    %c0_98 = arith.constant 0 : index
    %c0_99 = arith.constant 0 : index
    %146 = vector.load %arg6[%c0_98, %c0_99] : memref<1x128xf32, #tpu.memory_space<vmem>>, vector<1x128xf32>
    %147 = vector.broadcast %146 : vector<1x128xf32> to vector<16x128xf32>
    %148 = arith.addf %145, %147 : vector<16x128xf32>
    %c55_100 = arith.constant 55 : index
    %c0_101 = arith.constant 0 : index
    %149 = vector.load %arg9[%c55_100, %c0_101] : memref<144x128xf32, #tpu.memory_space<vmem>>, vector<16x128xf32>
    tpu.vector_store %arg9[%c55_100, %c0_101], %148 {strides = array<i32>} : memref<144x128xf32, #tpu.memory_space<vmem>>, vector<16x128xf32>,
    %c0_102 = arith.constant 0 : index
    %c0_103 = arith.constant 0 : index
    %150 = vector.load %arg5[%c0_102, %c0_103] : memref<1x128xf32, #tpu.memory_space<vmem>>, vector<1x128xf32>
    %151 = vector.broadcast %150 : vector<1x128xf32> to vector<16x128xf32>
    %152 = arith.mulf %109, %151 : vector<16x128xf32>
    %c0_104 = arith.constant 0 : index
    %c0_105 = arith.constant 0 : index
    %153 = vector.load %arg6[%c0_104, %c0_105] : memref<1x128xf32, #tpu.memory_space<vmem>>, vector<1x128xf32>
    %154 = vector.broadcast %153 : vector<1x128xf32> to vector<16x128xf32>
    %155 = arith.addf %152, %154 : vector<16x128xf32>
    %c73_106 = arith.constant 73 : index
    %c0_107 = arith.constant 0 : index
    %156 = vector.load %arg9[%c73_106, %c0_107] : memref<144x128xf32, #tpu.memory_space<vmem>>, vector<16x128xf32>
    tpu.vector_store %arg9[%c73_106, %c0_107], %155 {strides = array<i32>} : memref<144x128xf32, #tpu.memory_space<vmem>>, vector<16x128xf32>,
    %c0_108 = arith.constant 0 : index
    %c0_109 = arith.constant 0 : index
    %157 = vector.load %arg5[%c0_108, %c0_109] : memref<1x128xf32, #tpu.memory_space<vmem>>, vector<1x128xf32>
    %158 = vector.broadcast %157 : vector<1x128xf32> to vector<16x128xf32>
    %159 = arith.mulf %113, %158 : vector<16x128xf32>
    %c0_110 = arith.constant 0 : index
    %c0_111 = arith.constant 0 : index
    %160 = vector.load %arg6[%c0_110, %c0_111] : memref<1x128xf32, #tpu.memory_space<vmem>>, vector<1x128xf32>
    %161 = vector.broadcast %160 : vector<1x128xf32> to vector<16x128xf32>
    %162 = arith.addf %159, %161 : vector<16x128xf32>
    %c91_112 = arith.constant 91 : index
    %c0_113 = arith.constant 0 : index
    %163 = vector.load %arg9[%c91_112, %c0_113] : memref<144x128xf32, #tpu.memory_space<vmem>>, vector<16x128xf32>
    tpu.vector_store %arg9[%c91_112, %c0_113], %162 {strides = array<i32>} : memref<144x128xf32, #tpu.memory_space<vmem>>, vector<16x128xf32>,
    %c0_114 = arith.constant 0 : index
    %c0_115 = arith.constant 0 : index
    %164 = vector.load %arg5[%c0_114, %c0_115] : memref<1x128xf32, #tpu.memory_space<vmem>>, vector<1x128xf32>
    %165 = vector.broadcast %164 : vector<1x128xf32> to vector<16x128xf32>
    %166 = arith.mulf %117, %165 : vector<16x128xf32>
    %c0_116 = arith.constant 0 : index
    %c0_117 = arith.constant 0 : index
    %167 = vector.load %arg6[%c0_116, %c0_117] : memref<1x128xf32, #tpu.memory_space<vmem>>, vector<1x128xf32>
    %168 = vector.broadcast %167 : vector<1x128xf32> to vector<16x128xf32>
    %169 = arith.addf %166, %168 : vector<16x128xf32>
    %c109_118 = arith.constant 109 : index
    %c0_119 = arith.constant 0 : index
    %170 = vector.load %arg9[%c109_118, %c0_119] : memref<144x128xf32, #tpu.memory_space<vmem>>, vector<16x128xf32>
    tpu.vector_store %arg9[%c109_118, %c0_119], %169 {strides = array<i32>} : memref<144x128xf32, #tpu.memory_space<vmem>>, vector<16x128xf32>,
    %c0_120 = arith.constant 0 : index
    %c0_121 = arith.constant 0 : index
    %171 = vector.load %arg5[%c0_120, %c0_121] : memref<1x128xf32, #tpu.memory_space<vmem>>, vector<1x128xf32>
    %172 = vector.broadcast %171 : vector<1x128xf32> to vector<16x128xf32>
    %173 = arith.mulf %121, %172 : vector<16x128xf32>
    %c0_122 = arith.constant 0 : index
    %c0_123 = arith.constant 0 : index
    %174 = vector.load %arg6[%c0_122, %c0_123] : memref<1x128xf32, #tpu.memory_space<vmem>>, vector<1x128xf32>
    %175 = vector.broadcast %174 : vector<1x128xf32> to vector<16x128xf32>
    %176 = arith.addf %173, %175 : vector<16x128xf32>
    %c127_124 = arith.constant 127 : index
    %c0_125 = arith.constant 0 : index
    %177 = vector.load %arg9[%c127_124, %c0_125] : memref<144x128xf32, #tpu.memory_space<vmem>>, vector<16x128xf32>
    tpu.vector_store %arg9[%c127_124, %c0_125], %176 {strides = array<i32>} : memref<144x128xf32, #tpu.memory_space<vmem>>, vector<16x128xf32>,
    %c0_126 = arith.constant 0 : index
    %c0_127 = arith.constant 0 : index
    %178 = vector.load %arg9[%c0_126, %c0_127] : memref<144x128xf32, #tpu.memory_space<vmem>>, vector<144x128xf32>
    %179 = arith.truncf %178 : vector<144x128xf32> to vector<144x128xbf16>
    %c0_128 = arith.constant 0 : index
    %c0_129 = arith.constant 0 : index
    %180 = vector.load %arg7[%c0_128, %c0_129] : memref<128x384xbf16, #tpu.memory_space<vmem>>, vector<128x384xbf16>
    %cst_130 = arith.constant dense<0.000000e+00> : vector<144x384xf32>
    %181 = tpu.matmul %179, %180, %cst_130 {dimension_numbers = #tpu.dot_dimension_numbers<[1], [0], [0], [1], [0, 0, 1, 1], [], []>} : vector<144x128xbf16>, vector<128x384xbf16>, vector<144x384xf32> -> vector<144x384xf32>
    %182 = vector.extract_strided_slice %181 {offsets = [0, 0], sizes = [142, 128], strides = [1, 1]} : vector<144x384xf32> to vector<142x128xf32>
    %183 = vector.extract_strided_slice %181 {offsets = [1, 128], sizes = [142, 128], strides = [1, 1]} : vector<144x384xf32> to vector<142x128xf32>
    %184 = arith.addf %182, %183 : vector<142x128xf32>
    %185 = vector.extract_strided_slice %181 {offsets = [2, 256], sizes = [142, 128], strides = [1, 1]} : vector<144x384xf32> to vector<142x128xf32>
    %186 = arith.addf %184, %185 : vector<142x128xf32>
    %187 = vector.extract_strided_slice %186 {offsets = [0, 0], sizes = [16, 128], strides = [1, 1]} : vector<142x128xf32> to vector<16x128xf32>
    %cst_131 = arith.constant 0.000000e+00 : f32
    %188 = vector.broadcast %cst_131 : f32 to vector<16x128xf32>
    %189 = arith.maximumf %187, %188 : vector<16x128xf32>
    %190 = arith.addf %189, %93 : vector<16x128xf32>
    %191 = vector.extract_strided_slice %186 {offsets = [18, 0], sizes = [16, 128], strides = [1, 1]} : vector<142x128xf32> to vector<16x128xf32>
    %cst_132 = arith.constant 0.000000e+00 : f32
    %192 = vector.broadcast %cst_132 : f32 to vector<16x128xf32>
    %193 = arith.maximumf %191, %192 : vector<16x128xf32>
    %194 = arith.addf %193, %97 : vector<16x128xf32>
    %195 = vector.extract_strided_slice %186 {offsets = [36, 0], sizes = [16, 128], strides = [1, 1]} : vector<142x128xf32> to vector<16x128xf32>
    %cst_133 = arith.constant 0.000000e+00 : f32
    %196 = vector.broadcast %cst_133 : f32 to vector<16x128xf32>
    %197 = arith.maximumf %195, %196 : vector<16x128xf32>
    %198 = arith.addf %197, %101 : vector<16x128xf32>
    %199 = vector.extract_strided_slice %186 {offsets = [54, 0], sizes = [16, 128], strides = [1, 1]} : vector<142x128xf32> to vector<16x128xf32>
    %cst_134 = arith.constant 0.000000e+00 : f32
    %200 = vector.broadcast %cst_134 : f32 to vector<16x128xf32>
    %201 = arith.maximumf %199, %200 : vector<16x128xf32>
    %202 = arith.addf %201, %105 : vector<16x128xf32>
    %203 = vector.extract_strided_slice %186 {offsets = [72, 0], sizes = [16, 128], strides = [1, 1]} : vector<142x128xf32> to vector<16x128xf32>
    %cst_135 = arith.constant 0.000000e+00 : f32
    %204 = vector.broadcast %cst_135 : f32 to vector<16x128xf32>
    %205 = arith.maximumf %203, %204 : vector<16x128xf32>
    %206 = arith.addf %205, %109 : vector<16x128xf32>
    %207 = vector.extract_strided_slice %186 {offsets = [90, 0], sizes = [16, 128], strides = [1, 1]} : vector<142x128xf32> to vector<16x128xf32>
    %cst_136 = arith.constant 0.000000e+00 : f32
    %208 = vector.broadcast %cst_136 : f32 to vector<16x128xf32>
    %209 = arith.maximumf %207, %208 : vector<16x128xf32>
    %210 = arith.addf %209, %113 : vector<16x128xf32>
    %211 = vector.extract_strided_slice %186 {offsets = [108, 0], sizes = [16, 128], strides = [1, 1]} : vector<142x128xf32> to vector<16x128xf32>
    %cst_137 = arith.constant 0.000000e+00 : f32
    %212 = vector.broadcast %cst_137 : f32 to vector<16x128xf32>
    %213 = arith.maximumf %211, %212 : vector<16x128xf32>
    %214 = arith.addf %213, %117 : vector<16x128xf32>
    %215 = vector.extract_strided_slice %186 {offsets = [126, 0], sizes = [16, 128], strides = [1, 1]} : vector<142x128xf32> to vector<16x128xf32>
    %cst_138 = arith.constant 0.000000e+00 : f32
    %216 = vector.broadcast %cst_138 : f32 to vector<16x128xf32>
    %217 = arith.maximumf %215, %216 : vector<16x128xf32>
    %218 = arith.addf %217, %121 : vector<16x128xf32>
    %c0_139 = arith.constant 0 : index
    %c0_140 = arith.constant 0 : index
    %219 = vector.load %arg8[%c0_139, %c0_140] : memref<128x128xf32, #tpu.memory_space<vmem>>, vector<16x128xf32>
    tpu.vector_store %arg8[%c0_139, %c0_140], %190 {strides = array<i32>} : memref<128x128xf32, #tpu.memory_space<vmem>>, vector<16x128xf32>,
    %c16_141 = arith.constant 16 : index
    %c0_142 = arith.constant 0 : index
    %220 = vector.load %arg8[%c16_141, %c0_142] : memref<128x128xf32, #tpu.memory_space<vmem>>, vector<16x128xf32>
    tpu.vector_store %arg8[%c16_141, %c0_142], %194 {strides = array<i32>} : memref<128x128xf32, #tpu.memory_space<vmem>>, vector<16x128xf32>,
    %c32_143 = arith.constant 32 : index
    %c0_144 = arith.constant 0 : index
    %221 = vector.load %arg8[%c32_143, %c0_144] : memref<128x128xf32, #tpu.memory_space<vmem>>, vector<16x128xf32>
    tpu.vector_store %arg8[%c32_143, %c0_144], %198 {strides = array<i32>} : memref<128x128xf32, #tpu.memory_space<vmem>>, vector<16x128xf32>,
    %c48_145 = arith.constant 48 : index
    %c0_146 = arith.constant 0 : index
    %222 = vector.load %arg8[%c48_145, %c0_146] : memref<128x128xf32, #tpu.memory_space<vmem>>, vector<16x128xf32>
    tpu.vector_store %arg8[%c48_145, %c0_146], %202 {strides = array<i32>} : memref<128x128xf32, #tpu.memory_space<vmem>>, vector<16x128xf32>,
    %c64_147 = arith.constant 64 : index
    %c0_148 = arith.constant 0 : index
    %223 = vector.load %arg8[%c64_147, %c0_148] : memref<128x128xf32, #tpu.memory_space<vmem>>, vector<16x128xf32>
    tpu.vector_store %arg8[%c64_147, %c0_148], %206 {strides = array<i32>} : memref<128x128xf32, #tpu.memory_space<vmem>>, vector<16x128xf32>,
    %c80_149 = arith.constant 80 : index
    %c0_150 = arith.constant 0 : index
    %224 = vector.load %arg8[%c80_149, %c0_150] : memref<128x128xf32, #tpu.memory_space<vmem>>, vector<16x128xf32>
    tpu.vector_store %arg8[%c80_149, %c0_150], %210 {strides = array<i32>} : memref<128x128xf32, #tpu.memory_space<vmem>>, vector<16x128xf32>,
    %c96_151 = arith.constant 96 : index
    %c0_152 = arith.constant 0 : index
    %225 = vector.load %arg8[%c96_151, %c0_152] : memref<128x128xf32, #tpu.memory_space<vmem>>, vector<16x128xf32>
    tpu.vector_store %arg8[%c96_151, %c0_152], %214 {strides = array<i32>} : memref<128x128xf32, #tpu.memory_space<vmem>>, vector<16x128xf32>,
    %c112_153 = arith.constant 112 : index
    %c0_154 = arith.constant 0 : index
    %226 = vector.load %arg8[%c112_153, %c0_154] : memref<128x128xf32, #tpu.memory_space<vmem>>, vector<16x128xf32>
    tpu.vector_store %arg8[%c112_153, %c0_154], %218 {strides = array<i32>} : memref<128x128xf32, #tpu.memory_space<vmem>>, vector<16x128xf32>,
    return
  }
  func.func @transform_0(%arg0: i32) -> (i32, i32) {
    %c0_i32 = arith.constant 0 : i32
    %c0_i32_0 = arith.constant 0 : i32
    return %arg0, %c0_i32 : i32, i32
  }
  func.func @transform_1(%arg0: i32) -> (i32, i32) {
    %c0_i32 = arith.constant 0 : i32
    %c0_i32_0 = arith.constant 0 : i32
    %c0_i32_1 = arith.constant 0 : i32
    return %c0_i32, %c0_i32_0 : i32, i32
  }
  func.func @transform_2(%arg0: i32) -> (i32, i32) {
    %c0_i32 = arith.constant 0 : i32
    %c0_i32_0 = arith.constant 0 : i32
    %c0_i32_1 = arith.constant 0 : i32
    return %c0_i32, %c0_i32_0 : i32, i32
  }
  func.func @transform_3(%arg0: i32) -> (i32, i32) {
    %c0_i32 = arith.constant 0 : i32
    %c0_i32_0 = arith.constant 0 : i32
    %c0_i32_1 = arith.constant 0 : i32
    return %c0_i32, %c0_i32_0 : i32, i32
  }
  func.func @transform_4(%arg0: i32) -> (i32, i32) {
    %c0_i32 = arith.constant 0 : i32
    %c0_i32_0 = arith.constant 0 : i32
    %c0_i32_1 = arith.constant 0 : i32
    return %c0_i32, %c0_i32_0 : i32, i32
  }
  func.func @transform_5(%arg0: i32) -> (i32, i32) {
    %c0_i32 = arith.constant 0 : i32
    %c0_i32_0 = arith.constant 0 : i32
    %c0_i32_1 = arith.constant 0 : i32
    return %c0_i32, %c0_i32_0 : i32, i32
  }
  func.func @transform_6(%arg0: i32) -> (i32, i32) {
    %c0_i32 = arith.constant 0 : i32
    %c0_i32_0 = arith.constant 0 : i32
    %c0_i32_1 = arith.constant 0 : i32
    return %c0_i32, %c0_i32_0 : i32, i32
  }
  func.func @transform_7(%arg0: i32) -> (i32, i32) {
    %c0_i32 = arith.constant 0 : i32
    %c0_i32_0 = arith.constant 0 : i32
    return %arg0, %c0_i32 : i32, i32
  }
}

</mosaic_0001>

<llo_original>
// kernel: tpu_custom_call.1
$region0: #{tpu_custom_call.1}
  #allocation0 [shape = 'u32[]', space=smem, size = 0x4, offset = 0x4, fixed_abs, tag = 'smem constant byte address 0x4 - core index']
  #allocation1 [shape = 'u32[144,128]{1,0:T(1,128)}', space=vmem, size = 0x12000, scoped, tag = 'internal scratch']
  #allocation2 [shape = 'f32[144,128]{1,0:T(8,128)}', space=vmem, size = 0x12000, scoped, tag = 'scratch operand']
  %s0 = inlined_call_operand.hbm [shape: f32[256,128], index: 0, kind: input, shape index: {}]
  %s1 = inlined_call_operand.vmem [shape: f32[1,128], index: 1, kind: input, shape index: {}]
  %s2 = inlined_call_operand.vmem [shape: f32[1,128], index: 2, kind: input, shape index: {}]
  %s3 = inlined_call_operand.hbm [shape: bf16[128,384], index: 3, kind: input, shape index: {}]
  %s4 = inlined_call_operand.vmem [shape: f32[1,128], index: 4, kind: input, shape index: {}]
  %s5 = inlined_call_operand.vmem [shape: f32[1,128], index: 5, kind: input, shape index: {}]
  %s6 = inlined_call_operand.hbm [shape: bf16[128,384], index: 6, kind: input, shape index: {}]
  %s7 = inlined_call_operand.hbm [shape: f32[256,128], index: 7, kind: output, shape index: {}]
  %s8 = sld [smem:[#allocation0]]
  $region73: #{tpu_custom_call.1} parent=0
    _
  %s10 = ssub.s32 1, %s8
  %s11 = scalar_select 0, %s10, %s8
  $region1: #{tpu_custom_call.1} parent=0
    #allocation3 [shape = 'u8[131072]{0}', space=vmem, size = 0x20000, scoped, tag = 'input window, operand 0']
    #allocation4 [shape = 's32[2]{0}', space=sflag, size = 0x8, scoped, tag = 'scoped memory for tpu_custom_call.1']
    #allocation5 [shape = 's32[2]{0}', space=sflag, size = 0x8, scoped, tag = 'scoped memory for tpu_custom_call.1']
    #allocation6 [shape = 'u8[98304]{0}', space=vmem, size = 0x18000, scoped, tag = 'input window, operand 3, single buffered']
    #allocation7 [shape = 's32[1]{0}', space=sflag, size = 0x4, scoped, tag = 'scoped memory for tpu_custom_call.1']
    #allocation8 [shape = 'u8[98304]{0}', space=vmem, size = 0x18000, scoped, tag = 'input window, operand 6, single buffered']
    #allocation9 [shape = 'u8[131072]{0}', space=vmem, size = 0x20000, scoped, tag = 'output window, operand 0']
    %12 = vsyncpa [#allocation4], 0
    %s13 = scalar_lea.sflag [#allocation4], 1
    %14 = vsyncpa %s13, 0
    %15 = vsyncpa [#allocation7], 0
    %16 = vsyncpa [#allocation5], 0
    %s17 = scalar_lea.sflag [#allocation5], 1
    %18 = vsyncpa %s17, 0
    loop: start=0, step=1, limit=4
    $region2: #{tpu_custom_call.1} parent=1 // loop_pre_header
      _
    $region3: #{tpu_custom_call.1} parent=1 // loop_header
      %s20 = sphi 0, %s24
      %p21 = scmp.ge.s32.totalorder %s20, 4
      %s30 = sphi 0, %s32
      %s33 = sphi 0, %s30
      %s34 = sphi 0, %s33
      %s50 = sphi 0, %s34
      %s54 = sphi 0, %s54
      %s56 = sphi 0, %s54
      %s57 = sphi 0, %s56
      %s71 = sphi 0, %s57
      %s75 = sphi 0, %s75
      %s77 = sphi 0, %s75
      %s78 = sphi 0, %s77
      %s92 = sphi 0, %s78
      %s96 = sphi 0, %s96
      %s98 = sphi 0, %s96
      %s99 = sphi 0, %s98
      %s113 = sphi 0, %s99
      %s117 = sphi 0, %s117
      %s119 = sphi 0, %s117
      %s120 = sphi 0, %s119
      %s134 = sphi 0, %s120
      %s138 = sphi 0, %s138
      %s140 = sphi 0, %s138
      %s141 = sphi 0, %s140
      %s155 = sphi 0, %s141
      %s159 = sphi 0, %s159
      %s161 = sphi 0, %s159
      %s162 = sphi 0, %s161
      %s176 = sphi 0, %s162
      %s182 = sphi 0, %s184
      %s185 = sphi 0, %s182
      %s186 = sphi 0, %s185
      %s202 = sphi 0, %s186
    $region4: #{tpu_custom_call.1} parent=1 // loop_header_branch
      %23 = sbr.rel (%p21) target = $region8
    $region5: #{tpu_custom_call.1} parent=1 // loop_body
      %s25 = ssub.s32 %s20, 1
      %s26 = ssub.s32 %s20, 2
      %s27 = sadd.s32 %s20, 1
      %s28 = ssub.s32 %s20, %s27
      %p29 = scmp.eq.s32.totalorder %s28, 0
      %s31 = sadd.s32 %s30, 1
      %s32 = scalar_select %p29, %s30, %s31
      %p35 = pneg %p29
      %p36 = scmp.eq.s32.totalorder %s20, 1
      %p37 = por %p35, %p36
      %p38 = scmp.ne.s32.totalorder %s30, %s33
      %p39 = scmp.eq.s32.totalorder %s20, 0
      %p40 = por %p38, %p39
      %p41 = scmp.ne.s32.totalorder %s30, %s33
      %p42 = scmp.eq.s32.totalorder %s25, 1
      %p43 = por %p41, %p42
      %p44 = scmp.ne.s32.totalorder %s33, %s34
      %p45 = scmp.eq.s32.totalorder %s25, 0
      %p46 = por %p44, %p45
      %p47 = scmp.ne.s32.totalorder %s33, %s34
      %p48 = scmp.eq.s32.totalorder %s26, 1
      %p49 = por %p47, %p48
      %p51 = scmp.ne.s32.totalorder %s34, %s50
      %p52 = scmp.eq.s32.totalorder %s26, 0
      %p53 = por %p51, %p52
      %s55 = sadd.s32 %s54, 1
      %p58 = scmp.eq.s32.totalorder %s20, 1
      %p59 = scmp.ne.s32.totalorder %s54, %s56
      %p60 = scmp.eq.s32.totalorder %s20, 0
      %p61 = por %p59, %p60
      %p62 = scmp.ne.s32.totalorder %s54, %s56
      %p63 = scmp.eq.s32.totalorder %s25, 1
      %p64 = por %p62, %p63
      %p65 = scmp.ne.s32.totalorder %s56, %s57
      %p66 = scmp.eq.s32.totalorder %s25, 0
      %p67 = por %p65, %p66
      %p68 = scmp.ne.s32.totalorder %s56, %s57
      %p69 = scmp.eq.s32.totalorder %s26, 1
      %p70 = por %p68, %p69
      %p72 = scmp.ne.s32.totalorder %s57, %s71
      %p73 = scmp.eq.s32.totalorder %s26, 0
      %p74 = por %p72, %p73
      %s76 = sadd.s32 %s75, 1
      %p79 = scmp.eq.s32.totalorder %s20, 1
      %p80 = scmp.ne.s32.totalorder %s75, %s77
      %p81 = scmp.eq.s32.totalorder %s20, 0
      %p82 = por %p80, %p81
      %p83 = scmp.ne.s32.totalorder %s75, %s77
      %p84 = scmp.eq.s32.totalorder %s25, 1
      %p85 = por %p83, %p84
      %p86 = scmp.ne.s32.totalorder %s77, %s78
      %p87 = scmp.eq.s32.totalorder %s25, 0
      %p88 = por %p86, %p87
      %p89 = scmp.ne.s32.totalorder %s77, %s78
      %p90 = scmp.eq.s32.totalorder %s26, 1
      %p91 = por %p89, %p90
      %p93 = scmp.ne.s32.totalorder %s78, %s92
      %p94 = scmp.eq.s32.totalorder %s26, 0
      %p95 = por %p93, %p94
      %s97 = sadd.s32 %s96, 1
      %p100 = scmp.eq.s32.totalorder %s20, 1
      %p101 = scmp.ne.s32.totalorder %s96, %s98
      %p102 = scmp.eq.s32.totalorder %s20, 0
      %p103 = por %p101, %p102
      %p104 = scmp.ne.s32.totalorder %s96, %s98
      %p105 = scmp.eq.s32.totalorder %s25, 1
      %p106 = por %p104, %p105
      %p107 = scmp.ne.s32.totalorder %s98, %s99
      %p108 = scmp.eq.s32.totalorder %s25, 0
      %p109 = por %p107, %p108
      %p110 = scmp.ne.s32.totalorder %s98, %s99
      %p111 = scmp.eq.s32.totalorder %s26, 1
      %p112 = por %p110, %p111
      %p114 = scmp.ne.s32.totalorder %s99, %s113
      %p115 = scmp.eq.s32.totalorder %s26, 0
      %p116 = por %p114, %p115
      %s118 = sadd.s32 %s117, 1
      %p121 = scmp.eq.s32.totalorder %s20, 1
      %p122 = scmp.ne.s32.totalorder %s117, %s119
      %p123 = scmp.eq.s32.totalorder %s20, 0
      %p124 = por %p122, %p123
      %p125 = scmp.ne.s32.totalorder %s117, %s119
      %p126 = scmp.eq.s32.totalorder %s25, 1
      %p127 = por %p125, %p126
      %p128 = scmp.ne.s32.totalorder %s119, %s120
      %p129 = scmp.eq.s32.totalorder %s25, 0
      %p130 = por %p128, %p129
      %p131 = scmp.ne.s32.totalorder %s119, %s120
      %p132 = scmp.eq.s32.totalorder %s26, 1
      %p133 = por %p131, %p132
      %p135 = scmp.ne.s32.totalorder %s120, %s134
      %p136 = scmp.eq.s32.totalorder %s26, 0
      %p137 = por %p135, %p136
      %s139 = sadd.s32 %s138, 1
      %p142 = scmp.eq.s32.totalorder %s20, 1
      %p143 = scmp.ne.s32.totalorder %s138, %s140
      %p144 = scmp.eq.s32.totalorder %s20, 0
      %p145 = por %p143, %p144
      %p146 = scmp.ne.s32.totalorder %s138, %s140
      %p147 = scmp.eq.s32.totalorder %s25, 1
      %p148 = por %p146, %p147
      %p149 = scmp.ne.s32.totalorder %s140, %s141
      %p150 = scmp.eq.s32.totalorder %s25, 0
      %p151 = por %p149, %p150
      %p152 = scmp.ne.s32.totalorder %s140, %s141
      %p153 = scmp.eq.s32.totalorder %s26, 1
      %p154 = por %p152, %p153
      %p156 = scmp.ne.s32.totalorder %s141, %s155
      %p157 = scmp.eq.s32.totalorder %s26, 0
      %p158 = por %p156, %p157
      %s160 = sadd.s32 %s159, 1
      %p163 = scmp.eq.s32.totalorder %s20, 1
      %p164 = scmp.ne.s32.totalorder %s159, %s161
      %p165 = scmp.eq.s32.totalorder %s20, 0
      %p166 = por %p164, %p165
      %p167 = scmp.ne.s32.totalorder %s159, %s161
      %p168 = scmp.eq.s32.totalorder %s25, 1
      %p169 = por %p167, %p168
      %p170 = scmp.ne.s32.totalorder %s161, %s162
      %p171 = scmp.eq.s32.totalorder %s25, 0
      %p172 = por %p170, %p171
      %p173 = scmp.ne.s32.totalorder %s161, %s162
      %p174 = scmp.eq.s32.totalorder %s26, 1
      %p175 = por %p173, %p174
      %p177 = scmp.ne.s32.totalorder %s162, %s176
      %p178 = scmp.eq.s32.totalorder %s26, 0
      %p179 = por %p177, %p178
      %s180 = ssub.s32 %s20, %s27
      %p181 = scmp.eq.s32.totalorder %s180, 0
      %s183 = sadd.s32 %s182, 1
      %s184 = scalar_select %p181, %s182, %s183
      %p187 = pneg %p181
      %p188 = scmp.eq.s32.totalorder %s20, 1
      %p189 = por %p187, %p188
      %p190 = scmp.ne.s32.totalorder %s182, %s185
      %p191 = scmp.eq.s32.totalorder %s20, 0
      %p192 = por %p190, %p191
      %p193 = scmp.ne.s32.totalorder %s182, %s185
      %p194 = scmp.eq.s32.totalorder %s25, 1
      %p195 = por %p193, %p194
      %p196 = scmp.ne.s32.totalorder %s185, %s186
      %p197 = scmp.eq.s32.totalorder %s25, 0
      %p198 = por %p196, %p197
      %p199 = scmp.ne.s32.totalorder %s185, %s186
      %p200 = scmp.eq.s32.totalorder %s26, 1
      %p201 = por %p199, %p200
      %p203 = scmp.ne.s32.totalorder %s186, %s202
      %p204 = scmp.eq.s32.totalorder %s26, 0
      %p205 = por %p203, %p204
      %p206 = scmp.le.s32.totalorder 1, %s20
      %p207 = scmp.lt.s32.totalorder %s20, 3
      %p208 = pnand %p206, %p207
      %p209 = pneg %p208
      // Predicated region
      $region9: #{tpu_custom_call.1} parent=5 // pred_check
        _
      $region10: #{tpu_custom_call.1} parent=5 // pred_check_branch
        %211 = sbr.rel (%p208) target = $region12
      $region11: #{tpu_custom_call.1} parent=5 // pred_region
        %s212 = ssub.s32 %s20, 1
        // Predicated region
        $region13: #{tpu_custom_call.1} parent=11 // pred_check
          %p213 = pneg %p67
        $region14: #{tpu_custom_call.1} parent=11 // pred_check_branch
          %215 = sbr.rel (%p213) target = $region16
        $region15: #{tpu_custom_call.1} parent=11 // pred_region
          _
        $region16: #{tpu_custom_call.1} parent=11 // pred_fallthru
          _
        // Predicated region
        $region17: #{tpu_custom_call.1} parent=11 // pred_check
          %p216 = pneg %p88
        $region18: #{tpu_custom_call.1} parent=11 // pred_check_branch
          %218 = sbr.rel (%p216) target = $region20
        $region19: #{tpu_custom_call.1} parent=11 // pred_region
          _
        $region20: #{tpu_custom_call.1} parent=11 // pred_fallthru
          _
        // Predicated region
        $region21: #{tpu_custom_call.1} parent=11 // pred_check
          %p219 = pneg %p109
        $region22: #{tpu_custom_call.1} parent=11 // pred_check_branch
          %221 = sbr.rel (%p219) target = $region24
        $region23: #{tpu_custom_call.1} parent=11 // pred_region
          %s223 = ssub.s32 3072, 3072
          %224 = vsyncadd [#allocation7], %s223
          %s225 = sshll.u32 [#allocation6], 4
          %s226 = int_to_ptr.vmem [resolvable:$true] %s225
          %231 = dma.hbm_to_vmem [thread:$0]  %s3, 3072, %s226, [#allocation7], 192, 192, 12
        $region24: #{tpu_custom_call.1} parent=11 // pred_fallthru
          _
        // Predicated region
        $region25: #{tpu_custom_call.1} parent=11 // pred_check
          %p232 = pneg %p130
        $region26: #{tpu_custom_call.1} parent=11 // pred_check_branch
          %234 = sbr.rel (%p232) target = $region28
        $region27: #{tpu_custom_call.1} parent=11 // pred_region
          _
        $region28: #{tpu_custom_call.1} parent=11 // pred_fallthru
          _
        // Predicated region
        $region29: #{tpu_custom_call.1} parent=11 // pred_check
          %p235 = pneg %p151
        $region30: #{tpu_custom_call.1} parent=11 // pred_check_branch
          %237 = sbr.rel (%p235) target = $region32
        $region31: #{tpu_custom_call.1} parent=11 // pred_region
          _
        $region32: #{tpu_custom_call.1} parent=11 // pred_fallthru
          _
        // Predicated region
        $region33: #{tpu_custom_call.1} parent=11 // pred_check
          %p238 = pneg %p172
        $region34: #{tpu_custom_call.1} parent=11 // pred_check_branch
          %240 = sbr.rel (%p238) target = $region36
        $region35: #{tpu_custom_call.1} parent=11 // pred_region
          %s242 = ssub.s32 3072, 3072
          %243 = vsyncadd [#allocation7], %s242
          %s244 = sshll.u32 [#allocation8], 4
          %s245 = int_to_ptr.vmem [resolvable:$true] %s244
          %250 = dma.hbm_to_vmem [thread:$0]  %s6, 3072, %s245, [#allocation7], 192, 192, 12
        $region36: #{tpu_custom_call.1} parent=11 // pred_fallthru
          _
      $region12: #{tpu_custom_call.1} parent=5 // pred_fallthru
        _
      %p251 = scmp.lt.s32.totalorder %s20, 2
      // Predicated region
      $region37: #{tpu_custom_call.1} parent=5 // pred_check
        %p252 = pneg %p251
      $region38: #{tpu_custom_call.1} parent=5 // pred_check_branch
        %254 = sbr.rel (%p252) target = $region40
      $region39: #{tpu_custom_call.1} parent=5 // pred_region
        // Predicated region
        $region41: #{tpu_custom_call.1} parent=39 // pred_check
          %p255 = pneg %p40
        $region42: #{tpu_custom_call.1} parent=39 // pred_check_branch
          %257 = sbr.rel (%p255) target = $region44
        $region43: #{tpu_custom_call.1} parent=39 // pred_region
          %s258 = sand.u32 %s30, 1
          %s259 = scalar_lea.sflag [#allocation4], %s258
          %s260 = sand.u32 %s30, 1
          %s261 = smul.addr %s260, 128
          %s262 = scalar_lea.vmem [#allocation3], %s261
          %s263 = smul.u32 16, %s20
          %s265 = ssub.s32 2048, 2048
          %266 = vsyncadd %s259, %s265
          %s267 = smul.addr %s263, 128
          %s268 = scalar_lea.hbm %s0, %s267
          %s269 = sshll.u32 %s262, 4
          %s270 = int_to_ptr.vmem [resolvable:$true] %s269
          %275 = dma.hbm_to_vmem [thread:$0]  %s268, 2048, %s270, %s259, 128, 128, 8
        $region44: #{tpu_custom_call.1} parent=39 // pred_fallthru
          _
      $region40: #{tpu_custom_call.1} parent=5 // pred_fallthru
        _
      %p276 = scmp.le.s32.totalorder 1, %s20
      %p277 = scmp.lt.s32.totalorder %s20, 3
      %p278 = pnand %p276, %p277
      %p279 = pneg %p278
      // Predicated region
      $region45: #{tpu_custom_call.1} parent=5 // pred_check
        _
      $region46: #{tpu_custom_call.1} parent=5 // pred_check_branch
        %281 = sbr.rel (%p278) target = $region48
      $region47: #{tpu_custom_call.1} parent=5 // pred_region
        %s282 = ssub.s32 %s20, 1
        %s283 = sand.u32 %s33, 1
        %s284 = scalar_lea.sflag [#allocation4], %s283
        %s285 = sand.u32 %s33, 1
        %s286 = smul.addr %s285, 128
        %s287 = scalar_lea.vmem [#allocation3], %s286
        // Predicated region
        $region49: #{tpu_custom_call.1} parent=47 // pred_check
          %p288 = pneg %p46
        $region50: #{tpu_custom_call.1} parent=47 // pred_check_branch
          %290 = sbr.rel (%p288) target = $region52
        $region51: #{tpu_custom_call.1} parent=47 // pred_region
          %291 = dma.done %s284, 2048
        $region52: #{tpu_custom_call.1} parent=47 // pred_fallthru
          _
        // Predicated region
        $region53: #{tpu_custom_call.1} parent=47 // pred_check
          %p292 = pneg %p109
        $region54: #{tpu_custom_call.1} parent=47 // pred_check_branch
          %294 = sbr.rel (%p292) target = $region56
        $region55: #{tpu_custom_call.1} parent=47 // pred_region
          %295 = dma.done [#allocation7], 3072
        $region56: #{tpu_custom_call.1} parent=47 // pred_fallthru
          _
        // Predicated region
        $region57: #{tpu_custom_call.1} parent=47 // pred_check
          %p296 = pneg %p172
        $region58: #{tpu_custom_call.1} parent=47 // pred_check_branch
          %298 = sbr.rel (%p296) target = $region60
        $region59: #{tpu_custom_call.1} parent=47 // pred_region
          %299 = dma.done [#allocation7], 3072
        $region60: #{tpu_custom_call.1} parent=47 // pred_fallthru
          _
        %s300 = sand.u32 %s33, 1
        %s301 = scalar_lea.sflag [#allocation4], %s300
        %s302 = sand.u32 %s33, 1
        %s303 = smul.addr %s302, 128
        %s304 = scalar_lea.vmem [#allocation3], %s303
        %p305 = pneg %p46
        %p306 = pneg %p43
        %p307 = pneg %p67
        %p308 = pneg %p64
        %p309 = pneg %p88
        %p310 = pneg %p85
        %p311 = pneg %p109
        %p312 = pneg %p106
        %p313 = pneg %p130
        %p314 = pneg %p127
        %p315 = pneg %p151
        %p316 = pneg %p148
        %p317 = pneg %p172
        %p318 = pneg %p169
        %p319 = pneg %p198
        %p320 = pneg %p195
        %s321 = sand.u32 %s185, 1
        %s322 = scalar_lea.sflag [#allocation5], %s321
        %s323 = sand.u32 %s185, 1
        %s324 = smul.addr %s323, 128
        %s325 = scalar_lea.vmem [#allocation9], %s324
        %s326 = smul.u32 16, %s25
        %s327 = smul.u32 16, %s25
        %329 = vst [vmem:[#allocation2] sm:$0x1] 0.0
        %330 = vst [vmem:[#allocation2 + $0x11] sm:$0x1] 0.0
        %331 = vst [vmem:[#allocation2 + $0x12] sm:$0x1] 0.0
        %332 = vst [vmem:[#allocation2 + $0x23] sm:$0x1] 0.0
        %333 = vst [vmem:[#allocation2 + $0x24] sm:$0x1] 0.0
        %334 = vst [vmem:[#allocation2 + $0x35] sm:$0x1] 0.0
        %335 = vst [vmem:[#allocation2 + $0x36] sm:$0x1] 0.0
        %336 = vst [vmem:[#allocation2 + $0x47] sm:$0x1] 0.0
        %337 = vst [vmem:[#allocation2 + $0x48] sm:$0x1] 0.0
        %338 = vst [vmem:[#allocation2 + $0x59] sm:$0x1] 0.0
        %339 = vst [vmem:[#allocation2 + $0x5a] sm:$0x1] 0.0
        %340 = vst [vmem:[#allocation2 + $0x6b] sm:$0x1] 0.0
        %341 = vst [vmem:[#allocation2 + $0x6c] sm:$0x1] 0.0
        %342 = vst [vmem:[#allocation2 + $0x7d] sm:$0x1] 0.0
        %343 = vst [vmem:[#allocation2 + $0x7e] sm:$0x1] 0.0
        %344 = vst [vmem:[#allocation2 + $0x8f] sm:$0x1] 0.0
        %v345 = vld [vmem:[%s287] sm:$0xff]
        %v346 = vld [vmem:[%s287 + $0x8] sm:$0xff]
        %v347 = vld [vmem:[%s287 + $0x10] sm:$0xff]
        %v348 = vld [vmem:[%s287 + $0x18] sm:$0xff]
        %v349 = vld [vmem:[%s287 + $0x20] sm:$0xff]
        %v350 = vld [vmem:[%s287 + $0x28] sm:$0xff]
        %v351 = vld [vmem:[%s287 + $0x30] sm:$0xff]
        %v352 = vld [vmem:[%s287 + $0x38] sm:$0xff]
        %v353 = vld [vmem:[%s287 + $0x40] sm:$0xff]
        %v354 = vld [vmem:[%s287 + $0x48] sm:$0xff]
        %v355 = vld [vmem:[%s287 + $0x50] sm:$0xff]
        %v356 = vld [vmem:[%s287 + $0x58] sm:$0xff]
        %v357 = vld [vmem:[%s287 + $0x60] sm:$0xff]
        %v358 = vld [vmem:[%s287 + $0x68] sm:$0xff]
        %v359 = vld [vmem:[%s287 + $0x70] sm:$0xff]
        %v360 = vld [vmem:[%s287 + $0x78] sm:$0xff]
        %v361 = vld [vmem:[%s1] sm:$0x1]
        %v363 = vlaneseq
        %v364 = vshrl.u32 %v363, 7
        %v365 = vsub.s32 0, %v364
        %v366 = vrot.slane %v361, %v365
        %v368 = vmul.f32 %v345, %v366
        %v369 = vmul.f32 %v346, %v366
        %v370 = vld [vmem:[%s2] sm:$0x1]
        %v372 = vlaneseq
        %v373 = vshrl.u32 %v372, 7
        %v374 = vsub.s32 0, %v373
        %v375 = vrot.slane %v370, %v374
        %v377 = vadd.f32 %v368, %v375
        %v378 = vadd.f32 %v369, %v375
        %379 = vst [vmem:[#allocation2 + $0x1] sm:$0xff] %v377
        %380 = vst [vmem:[#allocation2 + $0x9] sm:$0xff] %v378
        %v381 = vld [vmem:[%s1] sm:$0x1]
        %v383 = vlaneseq
        %v384 = vshrl.u32 %v383, 7
        %v385 = vsub.s32 0, %v384
        %v386 = vrot.slane %v381, %v385
        %v388 = vmul.f32 %v347, %v386
        %v389 = vmul.f32 %v348, %v386
        %v390 = vld [vmem:[%s2] sm:$0x1]
        %v392 = vlaneseq
        %v393 = vshrl.u32 %v392, 7
        %v394 = vsub.s32 0, %v393
        %v395 = vrot.slane %v390, %v394
        %v397 = vadd.f32 %v388, %v395
        %v398 = vadd.f32 %v389, %v395
        %399 = vst [vmem:[#allocation2 + $0x13] sm:$0xff] %v397
        %400 = vst [vmem:[#allocation2 + $0x1b] sm:$0xff] %v398
        %v401 = vld [vmem:[%s1] sm:$0x1]
        %v403 = vlaneseq
        %v404 = vshrl.u32 %v403, 7
        %v405 = vsub.s32 0, %v404
        %v406 = vrot.slane %v401, %v405
        %v408 = vmul.f32 %v349, %v406
        %v409 = vmul.f32 %v350, %v406
        %v410 = vld [vmem:[%s2] sm:$0x1]
        %v412 = vlaneseq
        %v413 = vshrl.u32 %v412, 7
        %v414 = vsub.s32 0, %v413
        %v415 = vrot.slane %v410, %v414
        %v417 = vadd.f32 %v408, %v415
        %v418 = vadd.f32 %v409, %v415
        %419 = vst [vmem:[#allocation2 + $0x25] sm:$0xff] %v417
        %420 = vst [vmem:[#allocation2 + $0x2d] sm:$0xff] %v418
        %v421 = vld [vmem:[%s1] sm:$0x1]
        %v423 = vlaneseq
        %v424 = vshrl.u32 %v423, 7
        %v425 = vsub.s32 0, %v424
        %v426 = vrot.slane %v421, %v425
        %v428 = vmul.f32 %v351, %v426
        %v429 = vmul.f32 %v352, %v426
        %v430 = vld [vmem:[%s2] sm:$0x1]
        %v432 = vlaneseq
        %v433 = vshrl.u32 %v432, 7
        %v434 = vsub.s32 0, %v433
        %v435 = vrot.slane %v430, %v434
        %v437 = vadd.f32 %v428, %v435
        %v438 = vadd.f32 %v429, %v435
        %439 = vst [vmem:[#allocation2 + $0x37] sm:$0xff] %v437
        %440 = vst [vmem:[#allocation2 + $0x3f] sm:$0xff] %v438
        %v441 = vld [vmem:[%s1] sm:$0x1]
        %v443 = vlaneseq
        %v444 = vshrl.u32 %v443, 7
        %v445 = vsub.s32 0, %v444
        %v446 = vrot.slane %v441, %v445
        %v448 = vmul.f32 %v353, %v446
        %v449 = vmul.f32 %v354, %v446
        %v450 = vld [vmem:[%s2] sm:$0x1]
        %v452 = vlaneseq
        %v453 = vshrl.u32 %v452, 7
        %v454 = vsub.s32 0, %v453
        %v455 = vrot.slane %v450, %v454
        %v457 = vadd.f32 %v448, %v455
        %v458 = vadd.f32 %v449, %v455
        %459 = vst [vmem:[#allocation2 + $0x49] sm:$0xff] %v457
        %460 = vst [vmem:[#allocation2 + $0x51] sm:$0xff] %v458
        %v461 = vld [vmem:[%s1] sm:$0x1]
        %v463 = vlaneseq
        %v464 = vshrl.u32 %v463, 7
        %v465 = vsub.s32 0, %v464
        %v466 = vrot.slane %v461, %v465
        %v468 = vmul.f32 %v355, %v466
        %v469 = vmul.f32 %v356, %v466
        %v470 = vld [vmem:[%s2] sm:$0x1]
        %v472 = vlaneseq
        %v473 = vshrl.u32 %v472, 7
        %v474 = vsub.s32 0, %v473
        %v475 = vrot.slane %v470, %v474
        %v477 = vadd.f32 %v468, %v475
        %v478 = vadd.f32 %v469, %v475
        %479 = vst [vmem:[#allocation2 + $0x5b] sm:$0xff] %v477
        %480 = vst [vmem:[#allocation2 + $0x63] sm:$0xff] %v478
        %v481 = vld [vmem:[%s1] sm:$0x1]
        %v483 = vlaneseq
        %v484 = vshrl.u32 %v483, 7
        %v485 = vsub.s32 0, %v484
        %v486 = vrot.slane %v481, %v485
        %v488 = vmul.f32 %v357, %v486
        %v489 = vmul.f32 %v358, %v486
        %v490 = vld [vmem:[%s2] sm:$0x1]
        %v492 = vlaneseq
        %v493 = vshrl.u32 %v492, 7
        %v494 = vsub.s32 0, %v493
        %v495 = vrot.slane %v490, %v494
        %v497 = vadd.f32 %v488, %v495
        %v498 = vadd.f32 %v489, %v495
        %499 = vst [vmem:[#allocation2 + $0x6d] sm:$0xff] %v497
        %500 = vst [vmem:[#allocation2 + $0x75] sm:$0xff] %v498
        %v501 = vld [vmem:[%s1] sm:$0x1]
        %v503 = vlaneseq
        %v504 = vshrl.u32 %v503, 7
        %v505 = vsub.s32 0, %v504
        %v506 = vrot.slane %v501, %v505
        %v508 = vmul.f32 %v359, %v506
        %v509 = vmul.f32 %v360, %v506
        %v510 = vld [vmem:[%s2] sm:$0x1]
        %v512 = vlaneseq
        %v513 = vshrl.u32 %v512, 7
        %v514 = vsub.s32 0, %v513
        %v515 = vrot.slane %v510, %v514
        %v517 = vadd.f32 %v508, %v515
        %v518 = vadd.f32 %v509, %v515
        %519 = vst [vmem:[#allocation2 + $0x7f] sm:$0xff] %v517
        %520 = vst [vmem:[#allocation2 + $0x87] sm:$0xff] %v518
        %v521 = vld [vmem:[#allocation2] sm:$0xff]
        %v522 = vld [vmem:[#allocation2 + $0x8] sm:$0xff]
        %v523 = vld [vmem:[#allocation2 + $0x10] sm:$0xff]
        %v524 = vld [vmem:[#allocation2 + $0x18] sm:$0xff]
        %v525 = vld [vmem:[#allocation2 + $0x20] sm:$0xff]
        %v526 = vld [vmem:[#allocation2 + $0x28] sm:$0xff]
        %v527 = vld [vmem:[#allocation2 + $0x30] sm:$0xff]
        %v528 = vld [vmem:[#allocation2 + $0x38] sm:$0xff]
        %v529 = vld [vmem:[#allocation2 + $0x40] sm:$0xff]
        %v530 = vld [vmem:[#allocation2 + $0x48] sm:$0xff]
        %v531 = vld [vmem:[#allocation2 + $0x50] sm:$0xff]
        %v532 = vld [vmem:[#allocation2 + $0x58] sm:$0xff]
        %v533 = vld [vmem:[#allocation2 + $0x60] sm:$0xff]
        %v534 = vld [vmem:[#allocation2 + $0x68] sm:$0xff]
        %v535 = vld [vmem:[#allocation2 + $0x70] sm:$0xff]
        %v536 = vld [vmem:[#allocation2 + $0x78] sm:$0xff]
        %v537 = vld [vmem:[#allocation2 + $0x80] sm:$0xff]
        %v538 = vld [vmem:[#allocation2 + $0x88] sm:$0xff]
        %v539 = vpack.c.bf16 %v522, %v521
        %v540 = vpack.c.bf16 %v524, %v523
        %v541 = vpack.c.bf16 %v526, %v525
        %v542 = vpack.c.bf16 %v528, %v527
        %v543 = vpack.c.bf16 %v530, %v529
        %v544 = vpack.c.bf16 %v532, %v531
        %v545 = vpack.c.bf16 %v534, %v533
        %v546 = vpack.c.bf16 %v536, %v535
        %v547 = vpack.c.bf16 %v538, %v537
        %v548 = vld [vmem:[#allocation6] sm:$0xff]
        %v549 = vld [vmem:[#allocation6 + $0x8] sm:$0xf]
        %v550 = vld [vmem:[#allocation6 + $0xc] sm:$0xff]
        %v551 = vld [vmem:[#allocation6 + $0x14] sm:$0xf]
        %v552 = vld [vmem:[#allocation6 + $0x18] sm:$0xff]
        %v553 = vld [vmem:[#allocation6 + $0x20] sm:$0xf]
        %v554 = vld [vmem:[#allocation6 + $0x24] sm:$0xff]
        %v555 = vld [vmem:[#allocation6 + $0x2c] sm:$0xf]
        %v556 = vld [vmem:[#allocation6 + $0x30] sm:$0xff]
        %v557 = vld [vmem:[#allocation6 + $0x38] sm:$0xf]
        %v558 = vld [vmem:[#allocation6 + $0x3c] sm:$0xff]
        %v559 = vld [vmem:[#allocation6 + $0x44] sm:$0xf]
        %v560 = vld [vmem:[#allocation6 + $0x48] sm:$0xff]
        %v561 = vld [vmem:[#allocation6 + $0x50] sm:$0xf]
        %v562 = vld [vmem:[#allocation6 + $0x54] sm:$0xff]
        %v563 = vld [vmem:[#allocation6 + $0x5c] sm:$0xf]
        %v564 = vld [vmem:[#allocation6 + $0x60] sm:$0xff]
        %v565 = vld [vmem:[#allocation6 + $0x68] sm:$0xf]
        %v566 = vld [vmem:[#allocation6 + $0x6c] sm:$0xff]
        %v567 = vld [vmem:[#allocation6 + $0x74] sm:$0xf]
        %v568 = vld [vmem:[#allocation6 + $0x78] sm:$0xff]
        %v569 = vld [vmem:[#allocation6 + $0x80] sm:$0xf]
        %v570 = vld [vmem:[#allocation6 + $0x84] sm:$0xff]
        %v571 = vld [vmem:[#allocation6 + $0x8c] sm:$0xf]
        %v572 = vld [vmem:[#allocation6 + $0x90] sm:$0xff]
        %v573 = vld [vmem:[#allocation6 + $0x98] sm:$0xf]
        %v574 = vld [vmem:[#allocation6 + $0x9c] sm:$0xff]
        %v575 = vld [vmem:[#allocation6 + $0xa4] sm:$0xf]
        %v576 = vld [vmem:[#allocation6 + $0xa8] sm:$0xff]
        %v577 = vld [vmem:[#allocation6 + $0xb0] sm:$0xf]
        %v578 = vld [vmem:[#allocation6 + $0xb4] sm:$0xff]
        %v579 = vld [vmem:[#allocation6 + $0xbc] sm:$0xf]
        %v612 = vunpack.c.l.b16 %v548
        %v613 = vunpack.c.h.b16 %v548
        %v614 = vunpack.c.l.b16 %v549
        %v615 = vunpack.c.l.b16 %v550
        %v616 = vunpack.c.h.b16 %v550
        %v617 = vunpack.c.l.b16 %v551
        %v618 = vunpack.c.l.b16 %v552
        %v619 = vunpack.c.h.b16 %v552
        %v620 = vunpack.c.l.b16 %v553
        %v621 = vunpack.c.l.b16 %v554
        %v622 = vunpack.c.h.b16 %v554
        %v623 = vunpack.c.l.b16 %v555
        %v624 = vunpack.c.l.b16 %v556
        %v625 = vunpack.c.h.b16 %v556
        %v626 = vunpack.c.l.b16 %v557
        %v627 = vunpack.c.l.b16 %v558
        %v628 = vunpack.c.h.b16 %v558
        %v629 = vunpack.c.l.b16 %v559
        %v630 = vunpack.c.l.b16 %v560
        %v631 = vunpack.c.h.b16 %v560
        %v632 = vunpack.c.l.b16 %v561
        %v633 = vunpack.c.l.b16 %v562
        %v634 = vunpack.c.h.b16 %v562
        %v635 = vunpack.c.l.b16 %v563
        %v636 = vunpack.c.l.b16 %v564
        %v637 = vunpack.c.h.b16 %v564
        %v638 = vunpack.c.l.b16 %v565
        %v639 = vunpack.c.l.b16 %v566
        %v640 = vunpack.c.h.b16 %v566
        %v641 = vunpack.c.l.b16 %v567
        %v642 = vunpack.c.l.b16 %v568
        %v643 = vunpack.c.h.b16 %v568
        %v644 = vunpack.c.l.b16 %v569
        %v645 = vunpack.c.l.b16 %v570
        %v646 = vunpack.c.h.b16 %v570
        %v647 = vunpack.c.l.b16 %v571
        %v648 = vunpack.c.l.b16 %v572
        %v649 = vunpack.c.h.b16 %v572
        %v650 = vunpack.c.l.b16 %v573
        %v651 = vunpack.c.l.b16 %v574
        %v652 = vunpack.c.h.b16 %v574
        %v653 = vunpack.c.l.b16 %v575
        %v654 = vunpack.c.l.b16 %v576
        %v655 = vunpack.c.h.b16 %v576
        %v656 = vunpack.c.l.b16 %v577
        %v657 = vunpack.c.l.b16 %v578
        %v658 = vunpack.c.h.b16 %v578
        %v659 = vunpack.c.l.b16 %v579
        %v660 = vpack.c.b16 %v615, %v612
        %v661 = vpack.c.b16 %v616, %v613
        %v662 = vpack.c.b16 %v617, %v614
        %v663 = vpack.c.b16 %v621, %v618
        %v664 = vpack.c.b16 %v622, %v619
        %v665 = vpack.c.b16 %v623, %v620
        %v666 = vpack.c.b16 %v627, %v624
        %v667 = vpack.c.b16 %v628, %v625
        %v668 = vpack.c.b16 %v629, %v626
        %v669 = vpack.c.b16 %v633, %v630
        %v670 = vpack.c.b16 %v634, %v631
        %v671 = vpack.c.b16 %v635, %v632
        %v672 = vpack.c.b16 %v639, %v636
        %v673 = vpack.c.b16 %v640, %v637
        %v674 = vpack.c.b16 %v641, %v638
        %v675 = vpack.c.b16 %v645, %v642
        %v676 = vpack.c.b16 %v646, %v643
        %v677 = vpack.c.b16 %v647, %v644
        %v678 = vpack.c.b16 %v651, %v648
        %v679 = vpack.c.b16 %v652, %v649
        %v680 = vpack.c.b16 %v653, %v650
        %v681 = vpack.c.b16 %v657, %v654
        %v682 = vpack.c.b16 %v658, %v655
        %v683 = vpack.c.b16 %v659, %v656
        %708 = vmatprep.subr.bf16.mxu0 %v661
        %709 = vmatpush1.bf16.msra.mxu0 %v660
        %710 = vmatprep.subr.bf16.mxu0 %v664
        %711 = vmatpush1.bf16.msra.mxu0 %v663
        %712 = vmatprep.subr.bf16.mxu0 %v667
        %713 = vmatpush1.bf16.msra.mxu0 %v666
        %714 = vmatprep.subr.bf16.mxu0 %v670
        %715 = vmatpush1.bf16.msra.mxu0 %v669
        %716 = vmatprep.subr.bf16.mxu0 %v673
        %717 = vmatpush1.bf16.msra.mxu0 %v672
        %718 = vmatprep.subr.bf16.mxu0 %v676
        %719 = vmatpush1.bf16.msra.mxu0 %v675
        %720 = vmatprep.subr.bf16.mxu0 %v679
        %721 = vmatpush1.bf16.msra.mxu0 %v678
        %722 = vmatprep.subr.bf16.mxu0 %v682
        %723 = vmatpush1.bf16.msra.mxu0 %v681
        %724 = vmatprep.subr.bf16.mxu0 0
        %725 = vmatpush1.bf16.msra.mxu0 0
        %726 = vmatprep.subr.bf16.mxu0 0
        %727 = vmatpush1.bf16.msra.mxu0 0
        %728 = vmatprep.subr.bf16.mxu0 0
        %729 = vmatpush1.bf16.msra.mxu0 0
        %730 = vmatprep.subr.bf16.mxu0 0
        %731 = vmatpush1.bf16.msra.mxu0 0
        %732 = vmatprep.subr.bf16.mxu0 0
        %733 = vmatpush1.bf16.msra.mxu0 0
        %734 = vmatprep.subr.bf16.mxu0 0
        %735 = vmatpush1.bf16.msra.mxu0 0
        %736 = vmatprep.subr.bf16.mxu0 0
        %737 = vmatpush1.bf16.msra.mxu0 0
        %738 = vmatprep.subr.bf16.mxu0 0
        %739 = vmatpush1.bf16.msra.mxu0 0
        %740 = vmatprep.mubr.bf16.mxu0 0
        %741 = vmatmul.mubr.bf16.gmra.mrb[0].mxu0 %v539
        %v742 = vpop.f32.mrb[0].mxu0
        %v743 = vadd.f32 0.0, %v742
        %v744 = vpop.f32.mrb[0].mxu0
        %v745 = vadd.f32 0.0, %v744
        %v746 = vpop.f32.mrb[0].mxu0
        %v747 = vadd.f32 0.0, %v746
        %v748 = vpop.f32.mrb[0].mxu0
        %v749 = vadd.f32 0.0, %v748
        %750 = vmatprep.mubr.bf16.mxu0 0
        %751 = vmatmul.mubr.bf16.gmra.mrb[0].mxu0 %v540
        %v752 = vpop.f32.mrb[0].mxu0
        %v753 = vadd.f32 0.0, %v752
        %v754 = vpop.f32.mrb[0].mxu0
        %v755 = vadd.f32 0.0, %v754
        %v756 = vpop.f32.mrb[0].mxu0
        %v757 = vadd.f32 0.0, %v756
        %v758 = vpop.f32.mrb[0].mxu0
        %v759 = vadd.f32 0.0, %v758
        %760 = vmatprep.mubr.bf16.mxu0 0
        %761 = vmatmul.mubr.bf16.gmra.mrb[0].mxu0 %v541
        %v762 = vpop.f32.mrb[0].mxu0
        %v763 = vadd.f32 0.0, %v762
        %v764 = vpop.f32.mrb[0].mxu0
        %v765 = vadd.f32 0.0, %v764
        %v766 = vpop.f32.mrb[0].mxu0
        %v767 = vadd.f32 0.0, %v766
        %v768 = vpop.f32.mrb[0].mxu0
        %v769 = vadd.f32 0.0, %v768
        %770 = vmatprep.mubr.bf16.mxu0 0
        %771 = vmatmul.mubr.bf16.gmra.mrb[0].mxu0 %v542
        %v772 = vpop.f32.mrb[0].mxu0
        %v773 = vadd.f32 0.0, %v772
        %v774 = vpop.f32.mrb[0].mxu0
        %v775 = vadd.f32 0.0, %v774
        %v776 = vpop.f32.mrb[0].mxu0
        %v777 = vadd.f32 0.0, %v776
        %v778 = vpop.f32.mrb[0].mxu0
        %v779 = vadd.f32 0.0, %v778
        %780 = vmatprep.mubr.bf16.mxu0 0
        %781 = vmatmul.mubr.bf16.gmra.mrb[0].mxu0 %v543
        %v782 = vpop.f32.mrb[0].mxu0
        %v783 = vadd.f32 0.0, %v782
        %v784 = vpop.f32.mrb[0].mxu0
        %v785 = vadd.f32 0.0, %v784
        %v786 = vpop.f32.mrb[0].mxu0
        %v787 = vadd.f32 0.0, %v786
        %v788 = vpop.f32.mrb[0].mxu0
        %v789 = vadd.f32 0.0, %v788
        %790 = vmatprep.mubr.bf16.mxu0 0
        %791 = vmatmul.mubr.bf16.gmra.mrb[0].mxu0 %v544
        %v792 = vpop.f32.mrb[0].mxu0
        %v793 = vadd.f32 0.0, %v792
        %v794 = vpop.f32.mrb[0].mxu0
        %v795 = vadd.f32 0.0, %v794
        %v796 = vpop.f32.mrb[0].mxu0
        %v797 = vadd.f32 0.0, %v796
        %v798 = vpop.f32.mrb[0].mxu0
        %v799 = vadd.f32 0.0, %v798
        %800 = vmatprep.mubr.bf16.mxu0 0
        %801 = vmatmul.mubr.bf16.gmra.mrb[0].mxu0 %v545
        %v802 = vpop.f32.mrb[0].mxu0
        %v803 = vadd.f32 0.0, %v802
        %v804 = vpop.f32.mrb[0].mxu0
        %v805 = vadd.f32 0.0, %v804
        %v806 = vpop.f32.mrb[0].mxu0
        %v807 = vadd.f32 0.0, %v806
        %v808 = vpop.f32.mrb[0].mxu0
        %v809 = vadd.f32 0.0, %v808
        %810 = vmatprep.mubr.bf16.mxu0 0
        %811 = vmatmul.mubr.bf16.gmra.mrb[0].mxu0 %v546
        %v812 = vpop.f32.mrb[0].mxu0
        %v813 = vadd.f32 0.0, %v812
        %v814 = vpop.f32.mrb[0].mxu0
        %v815 = vadd.f32 0.0, %v814
        %v816 = vpop.f32.mrb[0].mxu0
        %v817 = vadd.f32 0.0, %v816
        %v818 = vpop.f32.mrb[0].mxu0
        %v819 = vadd.f32 0.0, %v818
        %820 = vmatprep.mubr.bf16.mxu0 0
        %821 = vmatmul.mubr.bf16.gmra.mrb[0].mxu0 %v547
        %v822 = vpop.f32.mrb[0].mxu0
        %v823 = vadd.f32 0.0, %v822
        %v824 = vpop.f32.mrb[0].mxu0
        %v825 = vadd.f32 0.0, %v824
        %v826 = vpop.f32.mrb[0].mxu0
        %v827 = vadd.f32 0.0, %v826
        %v828 = vpop.f32.mrb[0].mxu0
        %v829 = vadd.f32 0.0, %v828
        %830 = vdwg.mxu0
        %831 = vmatprep.subr.bf16.mxu0 0
        %832 = vmatpush1.bf16.msra.mxu0 %v662
        %833 = vmatprep.subr.bf16.mxu0 0
        %834 = vmatpush1.bf16.msra.mxu0 %v665
        %835 = vmatprep.subr.bf16.mxu0 0
        %836 = vmatpush1.bf16.msra.mxu0 %v668
        %837 = vmatprep.subr.bf16.mxu0 0
        %838 = vmatpush1.bf16.msra.mxu0 %v671
        %839 = vmatprep.subr.bf16.mxu0 0
        %840 = vmatpush1.bf16.msra.mxu0 %v674
        %841 = vmatprep.subr.bf16.mxu0 0
        %842 = vmatpush1.bf16.msra.mxu0 %v677
        %843 = vmatprep.subr.bf16.mxu0 0
        %844 = vmatpush1.bf16.msra.mxu0 %v680
        %845 = vmatprep.subr.bf16.mxu0 0
        %846 = vmatpush1.bf16.msra.mxu0 %v683
        %847 = vmatprep.subr.bf16.mxu0 0
        %848 = vmatpush1.bf16.msra.mxu0 0
        %849 = vmatprep.subr.bf16.mxu0 0
        %850 = vmatpush1.bf16.msra.mxu0 0
        %851 = vmatprep.subr.bf16.mxu0 0
        %852 = vmatpush1.bf16.msra.mxu0 0
        %853 = vmatprep.subr.bf16.mxu0 0
        %854 = vmatpush1.bf16.msra.mxu0 0
        %855 = vmatprep.subr.bf16.mxu0 0
        %856 = vmatpush1.bf16.msra.mxu0 0
        %857 = vmatprep.subr.bf16.mxu0 0
        %858 = vmatpush1.bf16.msra.mxu0 0
        %859 = vmatprep.subr.bf16.mxu0 0
        %860 = vmatpush1.bf16.msra.mxu0 0
        %861 = vmatprep.subr.bf16.mxu0 0
        %862 = vmatpush1.bf16.msra.mxu0 0
        %863 = vmatprep.mubr.bf16.mxu0 0
        %864 = vmatmul.mubr.bf16.gmra.mrb[0].mxu0 %v539
        %v865 = vpop.f32.mrb[0].mxu0
        %v866 = vadd.f32 0.0, %v865
        %v867 = vpop.f32.mrb[0].mxu0
        %v868 = vpop.f32.mrb[0].mxu0
        %v869 = vadd.f32 0.0, %v868
        %v870 = vpop.f32.mrb[0].mxu0
        %871 = vmatprep.mubr.bf16.mxu0 0
        %872 = vmatmul.mubr.bf16.gmra.mrb[0].mxu0 %v540
        %v873 = vpop.f32.mrb[0].mxu0
        %v874 = vadd.f32 0.0, %v873
        %v875 = vpop.f32.mrb[0].mxu0
        %v876 = vpop.f32.mrb[0].mxu0
        %v877 = vadd.f32 0.0, %v876
        %v878 = vpop.f32.mrb[0].mxu0
        %879 = vmatprep.mubr.bf16.mxu0 0
        %880 = vmatmul.mubr.bf16.gmra.mrb[0].mxu0 %v541
        %v881 = vpop.f32.mrb[0].mxu0
        %v882 = vadd.f32 0.0, %v881
        %v883 = vpop.f32.mrb[0].mxu0
        %v884 = vpop.f32.mrb[0].mxu0
        %v885 = vadd.f32 0.0, %v884
        %v886 = vpop.f32.mrb[0].mxu0
        %887 = vmatprep.mubr.bf16.mxu0 0
        %888 = vmatmul.mubr.bf16.gmra.mrb[0].mxu0 %v542
        %v889 = vpop.f32.mrb[0].mxu0
        %v890 = vadd.f32 0.0, %v889
        %v891 = vpop.f32.mrb[0].mxu0
        %v892 = vpop.f32.mrb[0].mxu0
        %v893 = vadd.f32 0.0, %v892
        %v894 = vpop.f32.mrb[0].mxu0
        %895 = vmatprep.mubr.bf16.mxu0 0
        %896 = vmatmul.mubr.bf16.gmra.mrb[0].mxu0 %v543
        %v897 = vpop.f32.mrb[0].mxu0
        %v898 = vadd.f32 0.0, %v897
        %v899 = vpop.f32.mrb[0].mxu0
        %v900 = vpop.f32.mrb[0].mxu0
        %v901 = vadd.f32 0.0, %v900
        %v902 = vpop.f32.mrb[0].mxu0
        %903 = vmatprep.mubr.bf16.mxu0 0
        %904 = vmatmul.mubr.bf16.gmra.mrb[0].mxu0 %v544
        %v905 = vpop.f32.mrb[0].mxu0
        %v906 = vadd.f32 0.0, %v905
        %v907 = vpop.f32.mrb[0].mxu0
        %v908 = vpop.f32.mrb[0].mxu0
        %v909 = vadd.f32 0.0, %v908
        %v910 = vpop.f32.mrb[0].mxu0
        %911 = vmatprep.mubr.bf16.mxu0 0
        %912 = vmatmul.mubr.bf16.gmra.mrb[0].mxu0 %v545
        %v913 = vpop.f32.mrb[0].mxu0
        %v914 = vadd.f32 0.0, %v913
        %v915 = vpop.f32.mrb[0].mxu0
        %v916 = vpop.f32.mrb[0].mxu0
        %v917 = vadd.f32 0.0, %v916
        %v918 = vpop.f32.mrb[0].mxu0
        %919 = vmatprep.mubr.bf16.mxu0 0
        %920 = vmatmul.mubr.bf16.gmra.mrb[0].mxu0 %v546
        %v921 = vpop.f32.mrb[0].mxu0
        %v922 = vadd.f32 0.0, %v921
        %v923 = vpop.f32.mrb[0].mxu0
        %v924 = vpop.f32.mrb[0].mxu0
        %v925 = vadd.f32 0.0, %v924
        %v926 = vpop.f32.mrb[0].mxu0
        %927 = vmatprep.mubr.bf16.mxu0 0
        %928 = vmatmul.mubr.bf16.gmra.mrb[0].mxu0 %v547
        %v929 = vpop.f32.mrb[0].mxu0
        %v930 = vadd.f32 0.0, %v929
        %v931 = vpop.f32.mrb[0].mxu0
        %v932 = vpop.f32.mrb[0].mxu0
        %v933 = vadd.f32 0.0, %v932
        %v934 = vpop.f32.mrb[0].mxu0
        %935 = vdwg.mxu0
        %vm954 = vcmask 1046528
        %v955 = vrot.slane %v745, 1
        %v956 = vrot.slane %v749, 1
        %v957 = vsel %vm954, %v955, %v956
        %v958 = vrot.slane %v755, 1
        %v959 = vsel %vm954, %v956, %v958
        %v960 = vrot.slane %v759, 1
        %v961 = vsel %vm954, %v958, %v960
        %v962 = vrot.slane %v765, 1
        %v963 = vsel %vm954, %v960, %v962
        %v964 = vrot.slane %v769, 1
        %v965 = vsel %vm954, %v962, %v964
        %v966 = vrot.slane %v775, 1
        %v967 = vsel %vm954, %v964, %v966
        %v968 = vrot.slane %v779, 1
        %v969 = vsel %vm954, %v966, %v968
        %v970 = vrot.slane %v785, 1
        %v971 = vsel %vm954, %v968, %v970
        %v972 = vrot.slane %v789, 1
        %v973 = vsel %vm954, %v970, %v972
        %v974 = vrot.slane %v795, 1
        %v975 = vsel %vm954, %v972, %v974
        %v976 = vrot.slane %v799, 1
        %v977 = vsel %vm954, %v974, %v976
        %v978 = vrot.slane %v805, 1
        %v979 = vsel %vm954, %v976, %v978
        %v980 = vrot.slane %v809, 1
        %v981 = vsel %vm954, %v978, %v980
        %v982 = vrot.slane %v815, 1
        %v983 = vsel %vm954, %v980, %v982
        %v984 = vrot.slane %v819, 1
        %v985 = vsel %vm954, %v982, %v984
        %v986 = vrot.slane %v825, 1
        %v987 = vsel %vm954, %v984, %v986
        %v988 = vrot.slane %v829, 1
        %v989 = vsel %vm954, %v986, %v988
        %v1008 = vadd.f32 %v743, %v957
        %v1009 = vadd.f32 %v747, %v959
        %v1010 = vadd.f32 %v753, %v961
        %v1011 = vadd.f32 %v757, %v963
        %v1012 = vadd.f32 %v763, %v965
        %v1013 = vadd.f32 %v767, %v967
        %v1014 = vadd.f32 %v773, %v969
        %v1015 = vadd.f32 %v777, %v971
        %v1016 = vadd.f32 %v783, %v973
        %v1017 = vadd.f32 %v787, %v975
        %v1018 = vadd.f32 %v793, %v977
        %v1019 = vadd.f32 %v797, %v979
        %v1020 = vadd.f32 %v803, %v981
        %v1021 = vadd.f32 %v807, %v983
        %v1022 = vadd.f32 %v813, %v985
        %v1023 = vadd.f32 %v817, %v987
        %v1024 = vadd.f32 %v823, %v989
        %v1025 = vadd.f32 %v827, %v988
        %vm1044 = vcmask 1045504
        %v1045 = vrot.slane %v866, 2
        %v1046 = vrot.slane %v869, 2
        %v1047 = vsel %vm1044, %v1045, %v1046
        %v1048 = vrot.slane %v874, 2
        %v1049 = vsel %vm1044, %v1046, %v1048
        %v1050 = vrot.slane %v877, 2
        %v1051 = vsel %vm1044, %v1048, %v1050
        %v1052 = vrot.slane %v882, 2
        %v1053 = vsel %vm1044, %v1050, %v1052
        %v1054 = vrot.slane %v885, 2
        %v1055 = vsel %vm1044, %v1052, %v1054
        %v1056 = vrot.slane %v890, 2
        %v1057 = vsel %vm1044, %v1054, %v1056
        %v1058 = vrot.slane %v893, 2
        %v1059 = vsel %vm1044, %v1056, %v1058
        %v1060 = vrot.slane %v898, 2
        %v1061 = vsel %vm1044, %v1058, %v1060
        %v1062 = vrot.slane %v901, 2
        %v1063 = vsel %vm1044, %v1060, %v1062
        %v1064 = vrot.slane %v906, 2
        %v1065 = vsel %vm1044, %v1062, %v1064
        %v1066 = vrot.slane %v909, 2
        %v1067 = vsel %vm1044, %v1064, %v1066
        %v1068 = vrot.slane %v914, 2
        %v1069 = vsel %vm1044, %v1066, %v1068
        %v1070 = vrot.slane %v917, 2
        %v1071 = vsel %vm1044, %v1068, %v1070
        %v1072 = vrot.slane %v922, 2
        %v1073 = vsel %vm1044, %v1070, %v1072
        %v1074 = vrot.slane %v925, 2
        %v1075 = vsel %vm1044, %v1072, %v1074
        %v1076 = vrot.slane %v930, 2
        %v1077 = vsel %vm1044, %v1074, %v1076
        %v1078 = vrot.slane %v933, 2
        %v1079 = vsel %vm1044, %v1076, %v1078
        %v1098 = vadd.f32 %v1008, %v1047
        %v1099 = vadd.f32 %v1009, %v1049
        %v1100 = vadd.f32 %v1010, %v1051
        %v1101 = vadd.f32 %v1011, %v1053
        %v1102 = vadd.f32 %v1012, %v1055
        %v1103 = vadd.f32 %v1013, %v1057
        %v1104 = vadd.f32 %v1014, %v1059
        %v1105 = vadd.f32 %v1015, %v1061
        %v1106 = vadd.f32 %v1016, %v1063
        %v1107 = vadd.f32 %v1017, %v1065
        %v1108 = vadd.f32 %v1018, %v1067
        %v1109 = vadd.f32 %v1019, %v1069
        %v1110 = vadd.f32 %v1020, %v1071
        %v1111 = vadd.f32 %v1021, %v1073
        %v1112 = vadd.f32 %v1022, %v1075
        %v1113 = vadd.f32 %v1023, %v1077
        %v1114 = vadd.f32 %v1024, %v1079
        %v1115 = vadd.f32 %v1025, %v1078
        %v1116 = vmax.f32 %v1098, 0.0
        %v1117 = vmax.f32 %v1099, 0.0
        %v1118 = vadd.f32 %v1116, %v345
        %v1119 = vadd.f32 %v1117, %v346
        %v1120 = vmax.f32 %v1100, 0.0
        %v1121 = vmax.f32 %v1101, 0.0
        %v1122 = vmax.f32 %v1102, 0.0
        %vm1125 = vcmask 1041408
        %v1126 = vrot.slane %v347, 6
        %v1127 = vrot.slane %v348, 6
        %v1128 = vsel %vm1125, %v1126, %v1127
        %v1132 = vadd.f32 %v1120, %v1126
        %v1133 = vadd.f32 %v1121, %v1128
        %v1134 = vadd.f32 %v1122, %v1127
        %v1135 = vmax.f32 %v1103, 0.0
        %v1136 = vmax.f32 %v1104, 0.0
        %vm1139 = vcmask 1043456
        %v1140 = vrot.slane %v349, 4
        %v1141 = vrot.slane %v350, 4
        %v1142 = vsel %vm1139, %v1140, %v1141
        %v1146 = vadd.f32 %v1122, %v1140
        %v1147 = vadd.f32 %v1135, %v1142
        %v1148 = vadd.f32 %v1136, %v1141
        %v1149 = vmax.f32 %v1105, 0.0
        %v1150 = vmax.f32 %v1106, 0.0
        %v1153 = vrot.slane %v351, 2
        %v1154 = vrot.slane %v352, 2
        %v1155 = vsel %vm1044, %v1153, %v1154
        %v1159 = vadd.f32 %v1136, %v1153
        %v1160 = vadd.f32 %v1149, %v1155
        %v1161 = vadd.f32 %v1150, %v1154
        %v1162 = vmax.f32 %v1107, 0.0
        %v1163 = vmax.f32 %v1108, 0.0
        %v1164 = vadd.f32 %v1162, %v353
        %v1165 = vadd.f32 %v1163, %v354
        %v1166 = vmax.f32 %v1109, 0.0
        %v1167 = vmax.f32 %v1110, 0.0
        %v1168 = vmax.f32 %v1111, 0.0
        %v1171 = vrot.slane %v355, 6
        %v1172 = vrot.slane %v356, 6
        %v1173 = vsel %vm1125, %v1171, %v1172
        %v1177 = vadd.f32 %v1166, %v1171
        %v1178 = vadd.f32 %v1167, %v1173
        %v1179 = vadd.f32 %v1168, %v1172
        %v1180 = vmax.f32 %v1112, 0.0
        %v1181 = vmax.f32 %v1113, 0.0
        %v1184 = vrot.slane %v357, 4
        %v1185 = vrot.slane %v358, 4
        %v1186 = vsel %vm1139, %v1184, %v1185
        %v1190 = vadd.f32 %v1168, %v1184
        %v1191 = vadd.f32 %v1180, %v1186
        %v1192 = vadd.f32 %v1181, %v1185
        %v1193 = vmax.f32 %v1114, 0.0
        %v1194 = vmax.f32 %v1115, 0.0
        %v1197 = vrot.slane %v359, 2
        %v1198 = vrot.slane %v360, 2
        %v1199 = vsel %vm1044, %v1197, %v1198
        %v1203 = vadd.f32 %v1181, %v1197
        %v1204 = vadd.f32 %v1193, %v1199
        %v1205 = vadd.f32 %v1194, %v1198
        %v1206 = vld [vmem:[%s4] sm:$0x1]
        %v1208 = vlaneseq
        %v1209 = vshrl.u32 %v1208, 7
        %v1210 = vsub.s32 0, %v1209
        %v1211 = vrot.slane %v1206, %v1210
        %v1213 = vmul.f32 %v1118, %v1211
        %v1214 = vmul.f32 %v1119, %v1211
        %v1215 = vld [vmem:[%s5] sm:$0x1]
        %v1217 = vlaneseq
        %v1218 = vshrl.u32 %v1217, 7
        %v1219 = vsub.s32 0, %v1218
        %v1220 = vrot.slane %v1215, %v1219
        %v1222 = vadd.f32 %v1213, %v1220
        %v1223 = vadd.f32 %v1214, %v1220
        %1224 = vst [vmem:[#allocation2 + $0x1] sm:$0xff] %v1222
        %1225 = vst [vmem:[#allocation2 + $0x9] sm:$0xff] %v1223
        %v1226 = vld [vmem:[%s4] sm:$0x1]
        %v1228 = vlaneseq
        %v1229 = vshrl.u32 %v1228, 7
        %v1230 = vsub.s32 0, %v1229
        %v1231 = vrot.slane %v1226, %v1230
        %v1233 = vmul.f32 %v1132, %v1231
        %v1234 = vmul.f32 %v1133, %v1231
        %v1235 = vmul.f32 %v1134, %v1231
        %v1236 = vld [vmem:[%s5] sm:$0x1]
        %v1238 = vlaneseq
        %v1239 = vshrl.u32 %v1238, 7
        %v1240 = vsub.s32 0, %v1239
        %v1241 = vrot.slane %v1236, %v1240
        %v1243 = vadd.f32 %v1233, %v1241
        %v1244 = vadd.f32 %v1234, %v1241
        %v1245 = vadd.f32 %v1235, %v1241
        %1246 = vst [vmem:[#allocation2 + $0x11] sm:$0xfc] %v1243
        %1247 = vst [vmem:[#allocation2 + $0x19] sm:$0xff] %v1244
        %1248 = vst [vmem:[#allocation2 + $0x21] sm:$0x3] %v1245
        %v1249 = vld [vmem:[%s4] sm:$0x1]
        %v1251 = vlaneseq
        %v1252 = vshrl.u32 %v1251, 7
        %v1253 = vsub.s32 0, %v1252
        %v1254 = vrot.slane %v1249, %v1253
        %v1256 = vmul.f32 %v1146, %v1254
        %v1257 = vmul.f32 %v1147, %v1254
        %v1258 = vmul.f32 %v1148, %v1254
        %v1259 = vld [vmem:[%s5] sm:$0x1]
        %v1261 = vlaneseq
        %v1262 = vshrl.u32 %v1261, 7
        %v1263 = vsub.s32 0, %v1262
        %v1264 = vrot.slane %v1259, %v1263
        %v1266 = vadd.f32 %v1256, %v1264
        %v1267 = vadd.f32 %v1257, %v1264
        %v1268 = vadd.f32 %v1258, %v1264
        %1269 = vst [vmem:[#allocation2 + $0x21] sm:$0xf0] %v1266
        %1270 = vst [vmem:[#allocation2 + $0x29] sm:$0xff] %v1267
        %1271 = vst [vmem:[#allocation2 + $0x31] sm:$0xf] %v1268
        %v1272 = vld [vmem:[%s4] sm:$0x1]
        %v1274 = vlaneseq
        %v1275 = vshrl.u32 %v1274, 7
        %v1276 = vsub.s32 0, %v1275
        %v1277 = vrot.slane %v1272, %v1276
        %v1279 = vmul.f32 %v1159, %v1277
        %v1280 = vmul.f32 %v1160, %v1277
        %v1281 = vmul.f32 %v1161, %v1277
        %v1282 = vld [vmem:[%s5] sm:$0x1]
        %v1284 = vlaneseq
        %v1285 = vshrl.u32 %v1284, 7
        %v1286 = vsub.s32 0, %v1285
        %v1287 = vrot.slane %v1282, %v1286
        %v1289 = vadd.f32 %v1279, %v1287
        %v1290 = vadd.f32 %v1280, %v1287
        %v1291 = vadd.f32 %v1281, %v1287
        %1292 = vst [vmem:[#allocation2 + $0x31] sm:$0xc0] %v1289
        %1293 = vst [vmem:[#allocation2 + $0x39] sm:$0xff] %v1290
        %1294 = vst [vmem:[#allocation2 + $0x41] sm:$0x3f] %v1291
        %v1295 = vld [vmem:[%s4] sm:$0x1]
        %v1297 = vlaneseq
        %v1298 = vshrl.u32 %v1297, 7
        %v1299 = vsub.s32 0, %v1298
        %v1300 = vrot.slane %v1295, %v1299
        %v1302 = vmul.f32 %v1164, %v1300
        %v1303 = vmul.f32 %v1165, %v1300
        %v1304 = vld [vmem:[%s5] sm:$0x1]
        %v1306 = vlaneseq
        %v1307 = vshrl.u32 %v1306, 7
        %v1308 = vsub.s32 0, %v1307
        %v1309 = vrot.slane %v1304, %v1308
        %v1311 = vadd.f32 %v1302, %v1309
        %v1312 = vadd.f32 %v1303, %v1309
        %1313 = vst [vmem:[#allocation2 + $0x49] sm:$0xff] %v1311
        %1314 = vst [vmem:[#allocation2 + $0x51] sm:$0xff] %v1312
        %v1315 = vld [vmem:[%s4] sm:$0x1]
        %v1317 = vlaneseq
        %v1318 = vshrl.u32 %v1317, 7
        %v1319 = vsub.s32 0, %v1318
        %v1320 = vrot.slane %v1315, %v1319
        %v1322 = vmul.f32 %v1177, %v1320
        %v1323 = vmul.f32 %v1178, %v1320
        %v1324 = vmul.f32 %v1179, %v1320
        %v1325 = vld [vmem:[%s5] sm:$0x1]
        %v1327 = vlaneseq
        %v1328 = vshrl.u32 %v1327, 7
        %v1329 = vsub.s32 0, %v1328
        %v1330 = vrot.slane %v1325, %v1329
        %v1332 = vadd.f32 %v1322, %v1330
        %v1333 = vadd.f32 %v1323, %v1330
        %v1334 = vadd.f32 %v1324, %v1330
        %1335 = vst [vmem:[#allocation2 + $0x59] sm:$0xfc] %v1332
        %1336 = vst [vmem:[#allocation2 + $0x61] sm:$0xff] %v1333
        %1337 = vst [vmem:[#allocation2 + $0x69] sm:$0x3] %v1334
        %v1338 = vld [vmem:[%s4] sm:$0x1]
        %v1340 = vlaneseq
        %v1341 = vshrl.u32 %v1340, 7
        %v1342 = vsub.s32 0, %v1341
        %v1343 = vrot.slane %v1338, %v1342
        %v1345 = vmul.f32 %v1190, %v1343
        %v1346 = vmul.f32 %v1191, %v1343
        %v1347 = vmul.f32 %v1192, %v1343
        %v1348 = vld [vmem:[%s5] sm:$0x1]
        %v1350 = vlaneseq
        %v1351 = vshrl.u32 %v1350, 7
        %v1352 = vsub.s32 0, %v1351
        %v1353 = vrot.slane %v1348, %v1352
        %v1355 = vadd.f32 %v1345, %v1353
        %v1356 = vadd.f32 %v1346, %v1353
        %v1357 = vadd.f32 %v1347, %v1353
        %1358 = vst [vmem:[#allocation2 + $0x69] sm:$0xf0] %v1355
        %1359 = vst [vmem:[#allocation2 + $0x71] sm:$0xff] %v1356
        %1360 = vst [vmem:[#allocation2 + $0x79] sm:$0xf] %v1357
        %v1361 = vld [vmem:[%s4] sm:$0x1]
        %v1363 = vlaneseq
        %v1364 = vshrl.u32 %v1363, 7
        %v1365 = vsub.s32 0, %v1364
        %v1366 = vrot.slane %v1361, %v1365
        %v1368 = vmul.f32 %v1203, %v1366
        %v1369 = vmul.f32 %v1204, %v1366
        %v1370 = vmul.f32 %v1205, %v1366
        %v1371 = vld [vmem:[%s5] sm:$0x1]
        %v1373 = vlaneseq
        %v1374 = vshrl.u32 %v1373, 7
        %v1375 = vsub.s32 0, %v1374
        %v1376 = vrot.slane %v1371, %v1375
        %v1378 = vadd.f32 %v1368, %v1376
        %v1379 = vadd.f32 %v1369, %v1376
        %v1380 = vadd.f32 %v1370, %v1376
        %1381 = vst [vmem:[#allocation2 + $0x79] sm:$0xc0] %v1378
        %1382 = vst [vmem:[#allocation2 + $0x81] sm:$0xff] %v1379
        %1383 = vst [vmem:[#allocation2 + $0x89] sm:$0x3f] %v1380
        %v1384 = vld [vmem:[#allocation2] sm:$0xff]
        %v1385 = vld [vmem:[#allocation2 + $0x8] sm:$0xff]
        %v1386 = vld [vmem:[#allocation2 + $0x10] sm:$0xff]
        %v1387 = vld [vmem:[#allocation2 + $0x18] sm:$0xff]
        %v1388 = vld [vmem:[#allocation2 + $0x20] sm:$0xff]
        %v1389 = vld [vmem:[#allocation2 + $0x28] sm:$0xff]
        %v1390 = vld [vmem:[#allocation2 + $0x30] sm:$0xff]
        %v1391 = vld [vmem:[#allocation2 + $0x38] sm:$0xff]
        %v1392 = vld [vmem:[#allocation2 + $0x40] sm:$0xff]
        %v1393 = vld [vmem:[#allocation2 + $0x48] sm:$0xff]
        %v1394 = vld [vmem:[#allocation2 + $0x50] sm:$0xff]
        %v1395 = vld [vmem:[#allocation2 + $0x58] sm:$0xff]
        %v1396 = vld [vmem:[#allocation2 + $0x60] sm:$0xff]
        %v1397 = vld [vmem:[#allocation2 + $0x68] sm:$0xff]
        %v1398 = vld [vmem:[#allocation2 + $0x70] sm:$0xff]
        %v1399 = vld [vmem:[#allocation2 + $0x78] sm:$0xff]
        %v1400 = vld [vmem:[#allocation2 + $0x80] sm:$0xff]
        %v1401 = vld [vmem:[#allocation2 + $0x88] sm:$0xff]
        %v1402 = vpack.c.bf16 %v1385, %v1384
        %v1403 = vpack.c.bf16 %v1387, %v1386
        %v1404 = vpack.c.bf16 %v1389, %v1388
        %v1405 = vpack.c.bf16 %v1391, %v1390
        %v1406 = vpack.c.bf16 %v1393, %v1392
        %v1407 = vpack.c.bf16 %v1395, %v1394
        %v1408 = vpack.c.bf16 %v1397, %v1396
        %v1409 = vpack.c.bf16 %v1399, %v1398
        %v1410 = vpack.c.bf16 %v1401, %v1400
        %v1411 = vld [vmem:[#allocation8] sm:$0xff]
        %v1412 = vld [vmem:[#allocation8 + $0x8] sm:$0xf]
        %v1413 = vld [vmem:[#allocation8 + $0xc] sm:$0xff]
        %v1414 = vld [vmem:[#allocation8 + $0x14] sm:$0xf]
        %v1415 = vld [vmem:[#allocation8 + $0x18] sm:$0xff]
        %v1416 = vld [vmem:[#allocation8 + $0x20] sm:$0xf]
        %v1417 = vld [vmem:[#allocation8 + $0x24] sm:$0xff]
        %v1418 = vld [vmem:[#allocation8 + $0x2c] sm:$0xf]
        %v1419 = vld [vmem:[#allocation8 + $0x30] sm:$0xff]
        %v1420 = vld [vmem:[#allocation8 + $0x38] sm:$0xf]
        %v1421 = vld [vmem:[#allocation8 + $0x3c] sm:$0xff]
        %v1422 = vld [vmem:[#allocation8 + $0x44] sm:$0xf]
        %v1423 = vld [vmem:[#allocation8 + $0x48] sm:$0xff]
        %v1424 = vld [vmem:[#allocation8 + $0x50] sm:$0xf]
        %v1425 = vld [vmem:[#allocation8 + $0x54] sm:$0xff]
        %v1426 = vld [vmem:[#allocation8 + $0x5c] sm:$0xf]
        %v1427 = vld [vmem:[#allocation8 + $0x60] sm:$0xff]
        %v1428 = vld [vmem:[#allocation8 + $0x68] sm:$0xf]
        %v1429 = vld [vmem:[#allocation8 + $0x6c] sm:$0xff]
        %v1430 = vld [vmem:[#allocation8 + $0x74] sm:$0xf]
        %v1431 = vld [vmem:[#allocation8 + $0x78] sm:$0xff]
        %v1432 = vld [vmem:[#allocation8 + $0x80] sm:$0xf]
        %v1433 = vld [vmem:[#allocation8 + $0x84] sm:$0xff]
        %v1434 = vld [vmem:[#allocation8 + $0x8c] sm:$0xf]
        %v1435 = vld [vmem:[#allocation8 + $0x90] sm:$0xff]
        %v1436 = vld [vmem:[#allocation8 + $0x98] sm:$0xf]
        %v1437 = vld [vmem:[#allocation8 + $0x9c] sm:$0xff]
        %v1438 = vld [vmem:[#allocation8 + $0xa4] sm:$0xf]
        %v1439 = vld [vmem:[#allocation8 + $0xa8] sm:$0xff]
        %v1440 = vld [vmem:[#allocation8 + $0xb0] sm:$0xf]
        %v1441 = vld [vmem:[#allocation8 + $0xb4] sm:$0xff]
        %v1442 = vld [vmem:[#allocation8 + $0xbc] sm:$0xf]
        %v1475 = vunpack.c.l.b16 %v1411
        %v1476 = vunpack.c.h.b16 %v1411
        %v1477 = vunpack.c.l.b16 %v1412
        %v1478 = vunpack.c.l.b16 %v1413
        %v1479 = vunpack.c.h.b16 %v1413
        %v1480 = vunpack.c.l.b16 %v1414
        %v1481 = vunpack.c.l.b16 %v1415
        %v1482 = vunpack.c.h.b16 %v1415
        %v1483 = vunpack.c.l.b16 %v1416
        %v1484 = vunpack.c.l.b16 %v1417
        %v1485 = vunpack.c.h.b16 %v1417
        %v1486 = vunpack.c.l.b16 %v1418
        %v1487 = vunpack.c.l.b16 %v1419
        %v1488 = vunpack.c.h.b16 %v1419
        %v1489 = vunpack.c.l.b16 %v1420
        %v1490 = vunpack.c.l.b16 %v1421
        %v1491 = vunpack.c.h.b16 %v1421
        %v1492 = vunpack.c.l.b16 %v1422
        %v1493 = vunpack.c.l.b16 %v1423
        %v1494 = vunpack.c.h.b16 %v1423
        %v1495 = vunpack.c.l.b16 %v1424
        %v1496 = vunpack.c.l.b16 %v1425
        %v1497 = vunpack.c.h.b16 %v1425
        %v1498 = vunpack.c.l.b16 %v1426
        %v1499 = vunpack.c.l.b16 %v1427
        %v1500 = vunpack.c.h.b16 %v1427
        %v1501 = vunpack.c.l.b16 %v1428
        %v1502 = vunpack.c.l.b16 %v1429
        %v1503 = vunpack.c.h.b16 %v1429
        %v1504 = vunpack.c.l.b16 %v1430
        %v1505 = vunpack.c.l.b16 %v1431
        %v1506 = vunpack.c.h.b16 %v1431
        %v1507 = vunpack.c.l.b16 %v1432
        %v1508 = vunpack.c.l.b16 %v1433
        %v1509 = vunpack.c.h.b16 %v1433
        %v1510 = vunpack.c.l.b16 %v1434
        %v1511 = vunpack.c.l.b16 %v1435
        %v1512 = vunpack.c.h.b16 %v1435
        %v1513 = vunpack.c.l.b16 %v1436
        %v1514 = vunpack.c.l.b16 %v1437
        %v1515 = vunpack.c.h.b16 %v1437
        %v1516 = vunpack.c.l.b16 %v1438
        %v1517 = vunpack.c.l.b16 %v1439
        %v1518 = vunpack.c.h.b16 %v1439
        %v1519 = vunpack.c.l.b16 %v1440
        %v1520 = vunpack.c.l.b16 %v1441
        %v1521 = vunpack.c.h.b16 %v1441
        %v1522 = vunpack.c.l.b16 %v1442
        %v1523 = vpack.c.b16 %v1478, %v1475
        %v1524 = vpack.c.b16 %v1479, %v1476
        %v1525 = vpack.c.b16 %v1480, %v1477
        %v1526 = vpack.c.b16 %v1484, %v1481
        %v1527 = vpack.c.b16 %v1485, %v1482
        %v1528 = vpack.c.b16 %v1486, %v1483
        %v1529 = vpack.c.b16 %v1490, %v1487
        %v1530 = vpack.c.b16 %v1491, %v1488
        %v1531 = vpack.c.b16 %v1492, %v1489
        %v1532 = vpack.c.b16 %v1496, %v1493
        %v1533 = vpack.c.b16 %v1497, %v1494
        %v1534 = vpack.c.b16 %v1498, %v1495
        %v1535 = vpack.c.b16 %v1502, %v1499
        %v1536 = vpack.c.b16 %v1503, %v1500
        %v1537 = vpack.c.b16 %v1504, %v1501
        %v1538 = vpack.c.b16 %v1508, %v1505
        %v1539 = vpack.c.b16 %v1509, %v1506
        %v1540 = vpack.c.b16 %v1510, %v1507
        %v1541 = vpack.c.b16 %v1514, %v1511
        %v1542 = vpack.c.b16 %v1515, %v1512
        %v1543 = vpack.c.b16 %v1516, %v1513
        %v1544 = vpack.c.b16 %v1520, %v1517
        %v1545 = vpack.c.b16 %v1521, %v1518
        %v1546 = vpack.c.b16 %v1522, %v1519
        %1571 = vmatprep.subr.bf16.mxu0 %v1524
        %1572 = vmatpush1.bf16.msra.mxu0 %v1523
        %1573 = vmatprep.subr.bf16.mxu0 %v1527
        %1574 = vmatpush1.bf16.msra.mxu0 %v1526
        %1575 = vmatprep.subr.bf16.mxu0 %v1530
        %1576 = vmatpush1.bf16.msra.mxu0 %v1529
        %1577 = vmatprep.subr.bf16.mxu0 %v1533
        %1578 = vmatpush1.bf16.msra.mxu0 %v1532
        %1579 = vmatprep.subr.bf16.mxu0 %v1536
        %1580 = vmatpush1.bf16.msra.mxu0 %v1535
        %1581 = vmatprep.subr.bf16.mxu0 %v1539
        %1582 = vmatpush1.bf16.msra.mxu0 %v1538
        %1583 = vmatprep.subr.bf16.mxu0 %v1542
        %1584 = vmatpush1.bf16.msra.mxu0 %v1541
        %1585 = vmatprep.subr.bf16.mxu0 %v1545
        %1586 = vmatpush1.bf16.msra.mxu0 %v1544
        %1587 = vmatprep.subr.bf16.mxu0 0
        %1588 = vmatpush1.bf16.msra.mxu0 0
        %1589 = vmatprep.subr.bf16.mxu0 0
        %1590 = vmatpush1.bf16.msra.mxu0 0
        %1591 = vmatprep.subr.bf16.mxu0 0
        %1592 = vmatpush1.bf16.msra.mxu0 0
        %1593 = vmatprep.subr.bf16.mxu0 0
        %1594 = vmatpush1.bf16.msra.mxu0 0
        %1595 = vmatprep.subr.bf16.mxu0 0
        %1596 = vmatpush1.bf16.msra.mxu0 0
        %1597 = vmatprep.subr.bf16.mxu0 0
        %1598 = vmatpush1.bf16.msra.mxu0 0
        %1599 = vmatprep.subr.bf16.mxu0 0
        %1600 = vmatpush1.bf16.msra.mxu0 0
        %1601 = vmatprep.subr.bf16.mxu0 0
        %1602 = vmatpush1.bf16.msra.mxu0 0
        %1603 = vmatprep.mubr.bf16.mxu0 0
        %1604 = vmatmul.mubr.bf16.gmra.mrb[0].mxu0 %v1402
        %v1605 = vpop.f32.mrb[0].mxu0
        %v1606 = vadd.f32 0.0, %v1605
        %v1607 = vpop.f32.mrb[0].mxu0
        %v1608 = vadd.f32 0.0, %v1607
        %v1609 = vpop.f32.mrb[0].mxu0
        %v1610 = vadd.f32 0.0, %v1609
        %v1611 = vpop.f32.mrb[0].mxu0
        %v1612 = vadd.f32 0.0, %v1611
        %1613 = vmatprep.mubr.bf16.mxu0 0
        %1614 = vmatmul.mubr.bf16.gmra.mrb[0].mxu0 %v1403
        %v1615 = vpop.f32.mrb[0].mxu0
        %v1616 = vadd.f32 0.0, %v1615
        %v1617 = vpop.f32.mrb[0].mxu0
        %v1618 = vadd.f32 0.0, %v1617
        %v1619 = vpop.f32.mrb[0].mxu0
        %v1620 = vadd.f32 0.0, %v1619
        %v1621 = vpop.f32.mrb[0].mxu0
        %v1622 = vadd.f32 0.0, %v1621
        %1623 = vmatprep.mubr.bf16.mxu0 0
        %1624 = vmatmul.mubr.bf16.gmra.mrb[0].mxu0 %v1404
        %v1625 = vpop.f32.mrb[0].mxu0
        %v1626 = vadd.f32 0.0, %v1625
        %v1627 = vpop.f32.mrb[0].mxu0
        %v1628 = vadd.f32 0.0, %v1627
        %v1629 = vpop.f32.mrb[0].mxu0
        %v1630 = vadd.f32 0.0, %v1629
        %v1631 = vpop.f32.mrb[0].mxu0
        %v1632 = vadd.f32 0.0, %v1631
        %1633 = vmatprep.mubr.bf16.mxu0 0
        %1634 = vmatmul.mubr.bf16.gmra.mrb[0].mxu0 %v1405
        %v1635 = vpop.f32.mrb[0].mxu0
        %v1636 = vadd.f32 0.0, %v1635
        %v1637 = vpop.f32.mrb[0].mxu0
        %v1638 = vadd.f32 0.0, %v1637
        %v1639 = vpop.f32.mrb[0].mxu0
        %v1640 = vadd.f32 0.0, %v1639
        %v1641 = vpop.f32.mrb[0].mxu0
        %v1642 = vadd.f32 0.0, %v1641
        %1643 = vmatprep.mubr.bf16.mxu0 0
        %1644 = vmatmul.mubr.bf16.gmra.mrb[0].mxu0 %v1406
        %v1645 = vpop.f32.mrb[0].mxu0
        %v1646 = vadd.f32 0.0, %v1645
        %v1647 = vpop.f32.mrb[0].mxu0
        %v1648 = vadd.f32 0.0, %v1647
        %v1649 = vpop.f32.mrb[0].mxu0
        %v1650 = vadd.f32 0.0, %v1649
        %v1651 = vpop.f32.mrb[0].mxu0
        %v1652 = vadd.f32 0.0, %v1651
        %1653 = vmatprep.mubr.bf16.mxu0 0
        %1654 = vmatmul.mubr.bf16.gmra.mrb[0].mxu0 %v1407
        %v1655 = vpop.f32.mrb[0].mxu0
        %v1656 = vadd.f32 0.0, %v1655
        %v1657 = vpop.f32.mrb[0].mxu0
        %v1658 = vadd.f32 0.0, %v1657
        %v1659 = vpop.f32.mrb[0].mxu0
        %v1660 = vadd.f32 0.0, %v1659
        %v1661 = vpop.f32.mrb[0].mxu0
        %v1662 = vadd.f32 0.0, %v1661
        %1663 = vmatprep.mubr.bf16.mxu0 0
        %1664 = vmatmul.mubr.bf16.gmra.mrb[0].mxu0 %v1408
        %v1665 = vpop.f32.mrb[0].mxu0
        %v1666 = vadd.f32 0.0, %v1665
        %v1667 = vpop.f32.mrb[0].mxu0
        %v1668 = vadd.f32 0.0, %v1667
        %v1669 = vpop.f32.mrb[0].mxu0
        %v1670 = vadd.f32 0.0, %v1669
        %v1671 = vpop.f32.mrb[0].mxu0
        %v1672 = vadd.f32 0.0, %v1671
        %1673 = vmatprep.mubr.bf16.mxu0 0
        %1674 = vmatmul.mubr.bf16.gmra.mrb[0].mxu0 %v1409
        %v1675 = vpop.f32.mrb[0].mxu0
        %v1676 = vadd.f32 0.0, %v1675
        %v1677 = vpop.f32.mrb[0].mxu0
        %v1678 = vadd.f32 0.0, %v1677
        %v1679 = vpop.f32.mrb[0].mxu0
        %v1680 = vadd.f32 0.0, %v1679
        %v1681 = vpop.f32.mrb[0].mxu0
        %v1682 = vadd.f32 0.0, %v1681
        %1683 = vmatprep.mubr.bf16.mxu0 0
        %1684 = vmatmul.mubr.bf16.gmra.mrb[0].mxu0 %v1410
        %v1685 = vpop.f32.mrb[0].mxu0
        %v1686 = vadd.f32 0.0, %v1685
        %v1687 = vpop.f32.mrb[0].mxu0
        %v1688 = vadd.f32 0.0, %v1687
        %v1689 = vpop.f32.mrb[0].mxu0
        %v1690 = vadd.f32 0.0, %v1689
        %v1691 = vpop.f32.mrb[0].mxu0
        %v1692 = vadd.f32 0.0, %v1691
        %1693 = vdwg.mxu0
        %1694 = vmatprep.subr.bf16.mxu0 0
        %1695 = vmatpush1.bf16.msra.mxu0 %v1525
        %1696 = vmatprep.subr.bf16.mxu0 0
        %1697 = vmatpush1.bf16.msra.mxu0 %v1528
        %1698 = vmatprep.subr.bf16.mxu0 0
        %1699 = vmatpush1.bf16.msra.mxu0 %v1531
        %1700 = vmatprep.subr.bf16.mxu0 0
        %1701 = vmatpush1.bf16.msra.mxu0 %v1534
        %1702 = vmatprep.subr.bf16.mxu0 0
        %1703 = vmatpush1.bf16.msra.mxu0 %v1537
        %1704 = vmatprep.subr.bf16.mxu0 0
        %1705 = vmatpush1.bf16.msra.mxu0 %v1540
        %1706 = vmatprep.subr.bf16.mxu0 0
        %1707 = vmatpush1.bf16.msra.mxu0 %v1543
        %1708 = vmatprep.subr.bf16.mxu0 0
        %1709 = vmatpush1.bf16.msra.mxu0 %v1546
        %1710 = vmatprep.subr.bf16.mxu0 0
        %1711 = vmatpush1.bf16.msra.mxu0 0
        %1712 = vmatprep.subr.bf16.mxu0 0
        %1713 = vmatpush1.bf16.msra.mxu0 0
        %1714 = vmatprep.subr.bf16.mxu0 0
        %1715 = vmatpush1.bf16.msra.mxu0 0
        %1716 = vmatprep.subr.bf16.mxu0 0
        %1717 = vmatpush1.bf16.msra.mxu0 0
        %1718 = vmatprep.subr.bf16.mxu0 0
        %1719 = vmatpush1.bf16.msra.mxu0 0
        %1720 = vmatprep.subr.bf16.mxu0 0
        %1721 = vmatpush1.bf16.msra.mxu0 0
        %1722 = vmatprep.subr.bf16.mxu0 0
        %1723 = vmatpush1.bf16.msra.mxu0 0
        %1724 = vmatprep.subr.bf16.mxu0 0
        %1725 = vmatpush1.bf16.msra.mxu0 0
        %1726 = vmatprep.mubr.bf16.mxu0 0
        %1727 = vmatmul.mubr.bf16.gmra.mrb[0].mxu0 %v1402
        %v1728 = vpop.f32.mrb[0].mxu0
        %v1729 = vadd.f32 0.0, %v1728
        %v1730 = vpop.f32.mrb[0].mxu0
        %v1731 = vpop.f32.mrb[0].mxu0
        %v1732 = vadd.f32 0.0, %v1731
        %v1733 = vpop.f32.mrb[0].mxu0
        %1734 = vmatprep.mubr.bf16.mxu0 0
        %1735 = vmatmul.mubr.bf16.gmra.mrb[0].mxu0 %v1403
        %v1736 = vpop.f32.mrb[0].mxu0
        %v1737 = vadd.f32 0.0, %v1736
        %v1738 = vpop.f32.mrb[0].mxu0
        %v1739 = vpop.f32.mrb[0].mxu0
        %v1740 = vadd.f32 0.0, %v1739
        %v1741 = vpop.f32.mrb[0].mxu0
        %1742 = vmatprep.mubr.bf16.mxu0 0
        %1743 = vmatmul.mubr.bf16.gmra.mrb[0].mxu0 %v1404
        %v1744 = vpop.f32.mrb[0].mxu0
        %v1745 = vadd.f32 0.0, %v1744
        %v1746 = vpop.f32.mrb[0].mxu0
        %v1747 = vpop.f32.mrb[0].mxu0
        %v1748 = vadd.f32 0.0, %v1747
        %v1749 = vpop.f32.mrb[0].mxu0
        %1750 = vmatprep.mubr.bf16.mxu0 0
        %1751 = vmatmul.mubr.bf16.gmra.mrb[0].mxu0 %v1405
        %v1752 = vpop.f32.mrb[0].mxu0
        %v1753 = vadd.f32 0.0, %v1752
        %v1754 = vpop.f32.mrb[0].mxu0
        %v1755 = vpop.f32.mrb[0].mxu0
        %v1756 = vadd.f32 0.0, %v1755
        %v1757 = vpop.f32.mrb[0].mxu0
        %1758 = vmatprep.mubr.bf16.mxu0 0
        %1759 = vmatmul.mubr.bf16.gmra.mrb[0].mxu0 %v1406
        %v1760 = vpop.f32.mrb[0].mxu0
        %v1761 = vadd.f32 0.0, %v1760
        %v1762 = vpop.f32.mrb[0].mxu0
        %v1763 = vpop.f32.mrb[0].mxu0
        %v1764 = vadd.f32 0.0, %v1763
        %v1765 = vpop.f32.mrb[0].mxu0
        %1766 = vmatprep.mubr.bf16.mxu0 0
        %1767 = vmatmul.mubr.bf16.gmra.mrb[0].mxu0 %v1407
        %v1768 = vpop.f32.mrb[0].mxu0
        %v1769 = vadd.f32 0.0, %v1768
        %v1770 = vpop.f32.mrb[0].mxu0
        %v1771 = vpop.f32.mrb[0].mxu0
        %v1772 = vadd.f32 0.0, %v1771
        %v1773 = vpop.f32.mrb[0].mxu0
        %1774 = vmatprep.mubr.bf16.mxu0 0
        %1775 = vmatmul.mubr.bf16.gmra.mrb[0].mxu0 %v1408
        %v1776 = vpop.f32.mrb[0].mxu0
        %v1777 = vadd.f32 0.0, %v1776
        %v1778 = vpop.f32.mrb[0].mxu0
        %v1779 = vpop.f32.mrb[0].mxu0
        %v1780 = vadd.f32 0.0, %v1779
        %v1781 = vpop.f32.mrb[0].mxu0
        %1782 = vmatprep.mubr.bf16.mxu0 0
        %1783 = vmatmul.mubr.bf16.gmra.mrb[0].mxu0 %v1409
        %v1784 = vpop.f32.mrb[0].mxu0
        %v1785 = vadd.f32 0.0, %v1784
        %v1786 = vpop.f32.mrb[0].mxu0
        %v1787 = vpop.f32.mrb[0].mxu0
        %v1788 = vadd.f32 0.0, %v1787
        %v1789 = vpop.f32.mrb[0].mxu0
        %1790 = vmatprep.mubr.bf16.mxu0 0
        %1791 = vmatmul.mubr.bf16.gmra.mrb[0].mxu0 %v1410
        %v1792 = vpop.f32.mrb[0].mxu0
        %v1793 = vadd.f32 0.0, %v1792
        %v1794 = vpop.f32.mrb[0].mxu0
        %v1795 = vpop.f32.mrb[0].mxu0
        %v1796 = vadd.f32 0.0, %v1795
        %v1797 = vpop.f32.mrb[0].mxu0
        %1798 = vdwg.mxu0
        %v1817 = vrot.slane %v1608, 1
        %v1818 = vrot.slane %v1612, 1
        %v1819 = vsel %vm954, %v1817, %v1818
        %v1820 = vrot.slane %v1618, 1
        %v1821 = vsel %vm954, %v1818, %v1820
        %v1822 = vrot.slane %v1622, 1
        %v1823 = vsel %vm954, %v1820, %v1822
        %v1824 = vrot.slane %v1628, 1
        %v1825 = vsel %vm954, %v1822, %v1824
        %v1826 = vrot.slane %v1632, 1
        %v1827 = vsel %vm954, %v1824, %v1826
        %v1828 = vrot.slane %v1638, 1
        %v1829 = vsel %vm954, %v1826, %v1828
        %v1830 = vrot.slane %v1642, 1
        %v1831 = vsel %vm954, %v1828, %v1830
        %v1832 = vrot.slane %v1648, 1
        %v1833 = vsel %vm954, %v1830, %v1832
        %v1834 = vrot.slane %v1652, 1
        %v1835 = vsel %vm954, %v1832, %v1834
        %v1836 = vrot.slane %v1658, 1
        %v1837 = vsel %vm954, %v1834, %v1836
        %v1838 = vrot.slane %v1662, 1
        %v1839 = vsel %vm954, %v1836, %v1838
        %v1840 = vrot.slane %v1668, 1
        %v1841 = vsel %vm954, %v1838, %v1840
        %v1842 = vrot.slane %v1672, 1
        %v1843 = vsel %vm954, %v1840, %v1842
        %v1844 = vrot.slane %v1678, 1
        %v1845 = vsel %vm954, %v1842, %v1844
        %v1846 = vrot.slane %v1682, 1
        %v1847 = vsel %vm954, %v1844, %v1846
        %v1848 = vrot.slane %v1688, 1
        %v1849 = vsel %vm954, %v1846, %v1848
        %v1850 = vrot.slane %v1692, 1
        %v1851 = vsel %vm954, %v1848, %v1850
        %v1870 = vadd.f32 %v1606, %v1819
        %v1871 = vadd.f32 %v1610, %v1821
        %v1872 = vadd.f32 %v1616, %v1823
        %v1873 = vadd.f32 %v1620, %v1825
        %v1874 = vadd.f32 %v1626, %v1827
        %v1875 = vadd.f32 %v1630, %v1829
        %v1876 = vadd.f32 %v1636, %v1831
        %v1877 = vadd.f32 %v1640, %v1833
        %v1878 = vadd.f32 %v1646, %v1835
        %v1879 = vadd.f32 %v1650, %v1837
        %v1880 = vadd.f32 %v1656, %v1839
        %v1881 = vadd.f32 %v1660, %v1841
        %v1882 = vadd.f32 %v1666, %v1843
        %v1883 = vadd.f32 %v1670, %v1845
        %v1884 = vadd.f32 %v1676, %v1847
        %v1885 = vadd.f32 %v1680, %v1849
        %v1886 = vadd.f32 %v1686, %v1851
        %v1887 = vadd.f32 %v1690, %v1850
        %v1906 = vrot.slane %v1729, 2
        %v1907 = vrot.slane %v1732, 2
        %v1908 = vsel %vm1044, %v1906, %v1907
        %v1909 = vrot.slane %v1737, 2
        %v1910 = vsel %vm1044, %v1907, %v1909
        %v1911 = vrot.slane %v1740, 2
        %v1912 = vsel %vm1044, %v1909, %v1911
        %v1913 = vrot.slane %v1745, 2
        %v1914 = vsel %vm1044, %v1911, %v1913
        %v1915 = vrot.slane %v1748, 2
        %v1916 = vsel %vm1044, %v1913, %v1915
        %v1917 = vrot.slane %v1753, 2
        %v1918 = vsel %vm1044, %v1915, %v1917
        %v1919 = vrot.slane %v1756, 2
        %v1920 = vsel %vm1044, %v1917, %v1919
        %v1921 = vrot.slane %v1761, 2
        %v1922 = vsel %vm1044, %v1919, %v1921
        %v1923 = vrot.slane %v1764, 2
        %v1924 = vsel %vm1044, %v1921, %v1923
        %v1925 = vrot.slane %v1769, 2
        %v1926 = vsel %vm1044, %v1923, %v1925
        %v1927 = vrot.slane %v1772, 2
        %v1928 = vsel %vm1044, %v1925, %v1927
        %v1929 = vrot.slane %v1777, 2
        %v1930 = vsel %vm1044, %v1927, %v1929
        %v1931 = vrot.slane %v1780, 2
        %v1932 = vsel %vm1044, %v1929, %v1931
        %v1933 = vrot.slane %v1785, 2
        %v1934 = vsel %vm1044, %v1931, %v1933
        %v1935 = vrot.slane %v1788, 2
        %v1936 = vsel %vm1044, %v1933, %v1935
        %v1937 = vrot.slane %v1793, 2
        %v1938 = vsel %vm1044, %v1935, %v1937
        %v1939 = vrot.slane %v1796, 2
        %v1940 = vsel %vm1044, %v1937, %v1939
        %v1959 = vadd.f32 %v1870, %v1908
        %v1960 = vadd.f32 %v1871, %v1910
        %v1961 = vadd.f32 %v1872, %v1912
        %v1962 = vadd.f32 %v1873, %v1914
        %v1963 = vadd.f32 %v1874, %v1916
        %v1964 = vadd.f32 %v1875, %v1918
        %v1965 = vadd.f32 %v1876, %v1920
        %v1966 = vadd.f32 %v1877, %v1922
        %v1967 = vadd.f32 %v1878, %v1924
        %v1968 = vadd.f32 %v1879, %v1926
        %v1969 = vadd.f32 %v1880, %v1928
        %v1970 = vadd.f32 %v1881, %v1930
        %v1971 = vadd.f32 %v1882, %v1932
        %v1972 = vadd.f32 %v1883, %v1934
        %v1973 = vadd.f32 %v1884, %v1936
        %v1974 = vadd.f32 %v1885, %v1938
        %v1975 = vadd.f32 %v1886, %v1940
        %v1976 = vadd.f32 %v1887, %v1939
        %v1977 = vmax.f32 %v1959, 0.0
        %v1978 = vmax.f32 %v1960, 0.0
        %v1979 = vadd.f32 %v1977, %v1118
        %v1980 = vadd.f32 %v1978, %v1119
        %v1981 = vmax.f32 %v1961, 0.0
        %v1982 = vmax.f32 %v1962, 0.0
        %v1983 = vmax.f32 %v1963, 0.0
        %v1984 = vadd.f32 %v1981, %v1132
        %v1985 = vadd.f32 %v1982, %v1133
        %v1986 = vadd.f32 %v1983, %v1134
        %v1987 = vmax.f32 %v1964, 0.0
        %v1988 = vmax.f32 %v1965, 0.0
        %v1989 = vadd.f32 %v1983, %v1146
        %v1990 = vadd.f32 %v1987, %v1147
        %v1991 = vadd.f32 %v1988, %v1148
        %v1992 = vmax.f32 %v1966, 0.0
        %v1993 = vmax.f32 %v1967, 0.0
        %v1994 = vadd.f32 %v1988, %v1159
        %v1995 = vadd.f32 %v1992, %v1160
        %v1996 = vadd.f32 %v1993, %v1161
        %v1997 = vmax.f32 %v1968, 0.0
        %v1998 = vmax.f32 %v1969, 0.0
        %v1999 = vadd.f32 %v1997, %v1164
        %v2000 = vadd.f32 %v1998, %v1165
        %v2001 = vmax.f32 %v1970, 0.0
        %v2002 = vmax.f32 %v1971, 0.0
        %v2003 = vmax.f32 %v1972, 0.0
        %v2004 = vadd.f32 %v2001, %v1177
        %v2005 = vadd.f32 %v2002, %v1178
        %v2006 = vadd.f32 %v2003, %v1179
        %v2007 = vmax.f32 %v1973, 0.0
        %v2008 = vmax.f32 %v1974, 0.0
        %v2009 = vadd.f32 %v2003, %v1190
        %v2010 = vadd.f32 %v2007, %v1191
        %v2011 = vadd.f32 %v2008, %v1192
        %v2012 = vmax.f32 %v1975, 0.0
        %v2013 = vmax.f32 %v1976, 0.0
        %v2014 = vadd.f32 %v2008, %v1203
        %v2015 = vadd.f32 %v2012, %v1204
        %v2016 = vadd.f32 %v2013, %v1205
        %2017 = vst [vmem:[%s325] sm:$0xff] %v1979
        %2018 = vst [vmem:[%s325 + $0x8] sm:$0xff] %v1980
        %2019 = vst [vmem:[%s325 + $0xe] sm:$0xfc] %v1984
        %2020 = vst [vmem:[%s325 + $0x16] sm:$0xff] %v1985
        %2021 = vst [vmem:[%s325 + $0x1e] sm:$0x3] %v1986
        %2022 = vst [vmem:[%s325 + $0x1c] sm:$0xf0] %v1989
        %2023 = vst [vmem:[%s325 + $0x24] sm:$0xff] %v1990
        %2024 = vst [vmem:[%s325 + $0x2c] sm:$0xf] %v1991
        %2025 = vst [vmem:[%s325 + $0x2a] sm:$0xc0] %v1994
        %2026 = vst [vmem:[%s325 + $0x32] sm:$0xff] %v1995
        %2027 = vst [vmem:[%s325 + $0x3a] sm:$0x3f] %v1996
        %2028 = vst [vmem:[%s325 + $0x40] sm:$0xff] %v1999
        %2029 = vst [vmem:[%s325 + $0x48] sm:$0xff] %v2000
        %2030 = vst [vmem:[%s325 + $0x4e] sm:$0xfc] %v2004
        %2031 = vst [vmem:[%s325 + $0x56] sm:$0xff] %v2005
        %2032 = vst [vmem:[%s325 + $0x5e] sm:$0x3] %v2006
        %2033 = vst [vmem:[%s325 + $0x5c] sm:$0xf0] %v2009
        %2034 = vst [vmem:[%s325 + $0x64] sm:$0xff] %v2010
        %2035 = vst [vmem:[%s325 + $0x6c] sm:$0xf] %v2011
        %2036 = vst [vmem:[%s325 + $0x6a] sm:$0xc0] %v2014
        %2037 = vst [vmem:[%s325 + $0x72] sm:$0xff] %v2015
        %2038 = vst [vmem:[%s325 + $0x7a] sm:$0x3f] %v2016
        %s2039 = sand.u32 %s185, 1
        %s2040 = scalar_lea.sflag [#allocation5], %s2039
        %s2041 = sand.u32 %s185, 1
        %s2042 = smul.addr %s2041, 128
        %s2043 = scalar_lea.vmem [#allocation9], %s2042
        // Predicated region
        $region61: #{tpu_custom_call.1} parent=47 // pred_check
          %p2044 = pneg %p195
        $region62: #{tpu_custom_call.1} parent=47 // pred_check_branch
          %2046 = sbr.rel (%p2044) target = $region64
        $region63: #{tpu_custom_call.1} parent=47 // pred_region
          %s2047 = smul.u32 16, %s25
          %s2049 = ssub.s32 2048, 2048
          %2050 = vsyncadd %s2040, %s2049
          %s2051 = smul.addr %s2047, 128
          %s2052 = scalar_lea.hbm %s7, %s2051
          %s2053 = sshll.u32 %s2043, 4
          %s2054 = int_to_ptr.vmem [resolvable:$true] %s2053
          %2059 = dma.vmem_to_hbm [thread:$0]  %s2054, 2048, %s2052, %s2040, 128, 128, 8
        $region64: #{tpu_custom_call.1} parent=47 // pred_fallthru
          _
      $region48: #{tpu_custom_call.1} parent=5 // pred_fallthru
        _
      %p2060 = scmp.le.s32.totalorder 2, %s20
      // Predicated region
      $region65: #{tpu_custom_call.1} parent=5 // pred_check
        %p2061 = pneg %p2060
      $region66: #{tpu_custom_call.1} parent=5 // pred_check_branch
        %2063 = sbr.rel (%p2061) target = $region68
      $region67: #{tpu_custom_call.1} parent=5 // pred_region
        %s2064 = ssub.s32 %s20, 2
        // Predicated region
        $region69: #{tpu_custom_call.1} parent=67 // pred_check
          %p2065 = pneg %p201
        $region70: #{tpu_custom_call.1} parent=67 // pred_check_branch
          %2067 = sbr.rel (%p2065) target = $region72
        $region71: #{tpu_custom_call.1} parent=67 // pred_region
          %s2068 = sand.u32 %s186, 1
          %s2069 = scalar_lea.sflag [#allocation5], %s2068
          %s2070 = sand.u32 %s186, 1
          %s2071 = smul.addr %s2070, 128
          %s2072 = scalar_lea.vmem [#allocation9], %s2071
          %2073 = dma.done %s2069, 2048
        $region72: #{tpu_custom_call.1} parent=67 // pred_fallthru
          _
      $region68: #{tpu_custom_call.1} parent=5 // pred_fallthru
        _
    $region6: #{tpu_custom_call.1} parent=1 // loop_footer
      %s24 = sadd.s32 1, %s20
    $region7: #{tpu_custom_call.1} parent=1 // loop_footer_branch
      %19 = sbr.rel target = $region3
    $region8: #{tpu_custom_call.1} parent=1 // loop_exit
      _
    %2074 = vsyncpa [#allocation4], 1
    %s2075 = scalar_lea.sflag [#allocation4], 1
    %2076 = vsyncpa %s2075, 1
    %2077 = vsyncpa [#allocation7], 1
    %2078 = vsyncpa [#allocation5], 1
    %s2079 = scalar_lea.sflag [#allocation5], 1
    %2080 = vsyncpa %s2079, 1

</llo_original>
